<compile_context>
chip_gen: v5e
topology: v5e:2x2
jax: 0.10.0
libtpu: 0.0.40
codegen_flags: <defaults>
</compile_context>

<pallas_src>
import functools

import jax
import jax.numpy as jnp
from jax import lax
from jax.experimental import pallas as pl
from jax.experimental.pallas import tpu as pltpu


def _gru_stacked_kernel(
    x_ref,        # (B, T, F)  f32   raw input, batch-first
    wtop_ref,     # (H, 7H)    bf16  h0-row of fused recurrent RHS
    wbot_ref,     # (H, 7H)    bf16  h1-row of fused recurrent RHS
    wx_ref,       # (F, 5H)    bf16  per-step input projection RHS (pre-padded)
    bstep_ref,    # (1, 7H)    f32   fused recurrent bias
    bx_ref,       # (1, 5H)    f32   input-projection bias (pre-padded)
    bhh0_ref,     # (1, 3H)    f32   layer-0 hidden bias (prologue, h0(-1)=0)
    wfc_ref,      # (H, O)     f32
    bfc_ref,      # (1, O)     f32
    out_ref,      # (B, O)     f32
    *, T, B, H,
):
    bf16 = jnp.bfloat16
    f32 = jnp.float32

    wtop = wtop_ref[...]
    wbot = wbot_ref[...]
    wx = wx_ref[...]
    # Hoist bias broadcasts out of the unrolled loop (JAX does not CSE them).
    b_step = jnp.broadcast_to(bstep_ref[...], (B, 7 * H))
    b_x = jnp.broadcast_to(bx_ref[...], (B, 5 * H))

    def in_proj(t):
        # x(t) @ Wih0, emitted into lanes [0|0|gi_r|gi_z|gi_n]; independent of
        # the recurrence -> pipelines on the MXU off the critical path.
        xt = x_ref[:, t, :].astype(bf16)                       # (B, F)
        return jnp.dot(xt, wx, preferred_element_type=f32) + b_x   # (B, 5H)

    # ---- prologue: layer-0 gates of step 0 (h0(-1) = 0  =>  gh0(0) = bhh0) --
    c = in_proj(0)
    rz_pro = jax.nn.sigmoid(c[:, 2 * H:4 * H] + bhh0_ref[:, :2 * H])
    r0 = rz_pro[:, :H]
    z0 = rz_pro[:, H:]
    gi0n = c[:, 4 * H:]                                        # (B, H)
    gh0n = bhh0_ref[:, 2 * H:]                                 # (1, H) broadcast
    h0 = jnp.zeros((B, H), f32)
    h1 = jnp.zeros((B, H), f32)

    # ---- fully unrolled recurrence (T small & static) -----------------------
    for t in range(T):
        # layer-0 cell for step t (r0/z0/gi0n/gh0n carried from previous iter)
        n0 = jnp.tanh(gi0n + r0 * gh0n)
        h0 = n0 + z0 * (h0 - n0)

        # one fused recurrent matmul round trip producing
        #   [ g1_r | g1_z | gh0_r | gh0_z | g1_in | g1_hn | gh0_n ]
        # i.e. layer-1 gates of step t AND layer-0 hidden proj of step t+1.
        a = jnp.dot(h0.astype(bf16), wtop, preferred_element_type=f32)
        b = jnp.dot(h1.astype(bf16), wbot, preferred_element_type=f32)
        s = a + b + b_step                                     # (B, 7H)

        last = (t + 1 == T)
        if not last:
            c = in_proj(t + 1)
            sig_in = s[:, :4 * H] + c[:, :4 * H]               # (B, 4H), aligned
        else:
            sig_in = s[:, :4 * H]                              # l0 lanes unused

        # single sigmoid for layer-1 r/z (step t) + layer-0 r/z (step t+1)
        rz = jax.nn.sigmoid(sig_in)
        r1 = rz[:, :H]
        z1 = rz[:, H:2 * H]

        # layer-1 cell for step t
        n1 = jnp.tanh(s[:, 4 * H:5 * H] + r1 * s[:, 5 * H:6 * H])
        h1 = n1 + z1 * (h1 - n1)

        if not last:
            r0 = rz[:, 2 * H:3 * H]
            z0 = rz[:, 3 * H:4 * H]
            gh0n = s[:, 6 * H:]
            gi0n = c[:, 4 * H:]

    # fc on the last timestep of the top layer
    out_ref[...] = (
        jnp.dot(h1, wfc_ref[...], preferred_element_type=f32) + bfc_ref[...]
    )


def prepare_params(params, *, hidden_size):
    """Build the fused kernel operands ONCE (outside the per-call path).

    Column-block layout of the fused recurrent RHS (each block H wide):
        [ g1_r | g1_z | gh0_r | gh0_z | g1_in | g1_hn | gh0_n ]     (7H lanes)
    Input-projection RHS (pre-padded so its r/z land on the gh0_r/gh0_z lanes):
        [  0   |  0   | gi0_r | gi0_z | gi0_n ]                      (5H lanes)
    MXU operands are stored in bf16; biases stay f32.
    """
    H = hidden_size
    f32 = jnp.float32
    wih0, whh0 = params["wih0"], params["whh0"]
    bih0, bhh0 = params["bih0"], params["bhh0"]
    wih1, whh1 = params["wih1"], params["whh1"]
    bih1, bhh1 = params["bih1"], params["bhh1"]
    F = wih0.shape[0]

    zH = jnp.zeros((H, H), f32)
    zF = jnp.zeros((F, H), f32)

    w_top = jnp.concatenate(
        [wih1[:, :H], wih1[:, H:2 * H], whh0[:, :H], whh0[:, H:2 * H],
         wih1[:, 2 * H:], zH, whh0[:, 2 * H:]], axis=1)                 # (H, 7H)
    w_bot = jnp.concatenate(
        [whh1[:, :H], whh1[:, H:2 * H], zH, zH, zH,
         whh1[:, 2 * H:], zH], axis=1)                                  # (H, 7H)
    w_x = jnp.concatenate(
        [zF, zF, wih0[:, :H], wih0[:, H:2 * H], wih0[:, 2 * H:]], axis=1)  # (F, 5H)

    b_step = jnp.concatenate(
        [bih1[:, :H] + bhh1[:, :H], bih1[:, H:2 * H] + bhh1[:, H:2 * H],
         bhh0[:, :H], bhh0[:, H:2 * H],
         bih1[:, 2 * H:], bhh1[:, 2 * H:], bhh0[:, 2 * H:]], axis=1)     # (1, 7H)
    b_x = jnp.concatenate(
        [jnp.zeros((1, 2 * H), f32), bih0], axis=1)                      # (1, 5H)

    bf16 = jnp.bfloat16
    return {
        "w_top": w_top.astype(bf16),
        "w_bot": w_bot.astype(bf16),
        "w_x": w_x.astype(bf16),
        "b_step": b_step,
        "b_x": b_x,
        "bhh0": bhh0,
        "wfc": params["wfc"],
        "bfc": params["bfc"],
    }


def gru_stacked_forward(x, prepped, *, label_width, num_inputs, hidden_size):
    """x: (B, T, F) batch-first, float32. Returns (B, label_width, num_inputs)."""
    B, T, F = x.shape
    H = hidden_size
    O = label_width * num_inputs

    kernel = functools.partial(_gru_stacked_kernel, T=T, B=B, H=H)
    vmem = lambda: pl.BlockSpec(memory_space=pltpu.MemorySpace.VMEM)

    out = pl.pallas_call(
        kernel,
        out_shape=jax.ShapeDtypeStruct((B, O), jnp.float32),
        in_specs=[vmem() for _ in range(9)],
        out_specs=vmem(),
    )(
        x,
        prepped["w_top"], prepped["w_bot"], prepped["w_x"],
        prepped["b_step"], prepped["b_x"], prepped["bhh0"],
        prepped["wfc"], prepped["bfc"],
    )
    return out.reshape(-1, label_width, num_inputs)


def init_params(key, *, num_inputs, hidden_size, label_width):
    """Deterministic init mirroring PyTorch's U(-1/sqrt(H), 1/sqrt(H)) shapes.

    Weights stored pre-transposed to (in_dim, 3H) / (H, out_dim).
    """
    H, F = hidden_size, num_inputs
    O = label_width * num_inputs
    bound = 1.0 / jnp.sqrt(jnp.float32(H))
    keys = jax.random.split(key, 10)

    def u(k, shape):
        return jax.random.uniform(k, shape, jnp.float32, -bound, bound)

    return {
        # layer 0: input size F
        "wih0": u(keys[0], (F, 3 * H)),
        "whh0": u(keys[1], (H, 3 * H)),
        "bih0": u(keys[2], (1, 3 * H)),
        "bhh0": u(keys[3], (1, 3 * H)),
        # layer 1: input size H
        "wih1": u(keys[4], (H, 3 * H)),
        "whh1": u(keys[5], (H, 3 * H)),
        "bih1": u(keys[6], (1, 3 * H)),
        "bhh1": u(keys[7], (1, 3 * H)),
        # fc: Linear(H, label_width * num_inputs)
        "wfc": u(keys[8], (H, O)),
        "bfc": u(keys[9], (1, O)),
    }


def reference_forward(x, params, *, label_width, num_inputs, hidden_size):
    """Pure-JAX reference of the same PyTorch forward (for validation)."""
    B, T, F = x.shape
    H = hidden_size
    hi = lax.Precision.HIGHEST

    def cell(x_t, h, wih, whh, bih, bhh):
        gi = jnp.dot(x_t, wih, precision=hi) + bih
        gh = jnp.dot(h, whh, precision=hi) + bhh
        r = jax.nn.sigmoid(gi[:, :H] + gh[:, :H])
        z = jax.nn.sigmoid(gi[:, H:2 * H] + gh[:, H:2 * H])
        n = jnp.tanh(gi[:, 2 * H:] + r * gh[:, 2 * H:])
        return (1.0 - z) * n + z * h

    h0 = jnp.zeros((B, H), jnp.float32)
    h1 = jnp.zeros((B, H), jnp.float32)
    for t in range(T):
        x_t = x[:, t, :]
        h0 = cell(x_t, h0, params["wih0"], params["whh0"], params["bih0"], params["bhh0"])
        h1 = cell(h0, h1, params["wih1"], params["whh1"], params["bih1"], params["bhh1"])
    out = jnp.dot(h1, params["wfc"], precision=hi) + params["bfc"]
    return out.reshape(-1, label_width, num_inputs)


if __name__ == "__main__":
    # Small shapes consistent with the module: batch=2, seq=8, num_inputs=4,
    # hidden_size=32, num_layers=2, label_width=4.
    B, T = 2, 8
    NUM_INPUTS = 4
    HIDDEN = 32
    LABEL_WIDTH = 4

    key = jax.random.PRNGKey(0)
    kx, kp = jax.random.split(key)
    x = jax.random.normal(kx, (B, T, NUM_INPUTS), jnp.float32)
    params = init_params(
        kp, num_inputs=NUM_INPUTS, hidden_size=HIDDEN, label_width=LABEL_WIDTH
    )
    prepped = prepare_params(params, hidden_size=HIDDEN)   # once, off hot path

    fwd = jax.jit(functools.partial(
        gru_stacked_forward,
        label_width=LABEL_WIDTH, num_inputs=NUM_INPUTS, hidden_size=HIDDEN,
    ))
    out = jax.block_until_ready(fwd(x, prepped))

    ref = reference_forward(
        x, params,
        label_width=LABEL_WIDTH, num_inputs=NUM_INPUTS, hidden_size=HIDDEN,
    )
    assert out.shape == (B, LABEL_WIDTH, NUM_INPUTS), out.shape
    # bf16 MXU operands vs HIGHEST-precision f32 reference -> loosened tolerance.
    max_err = float(jnp.max(jnp.abs(out - ref)))
    assert jnp.allclose(out, ref, rtol=2e-2, atol=2e-2), ("mismatch vs reference", max_err)

    print("KERNEL_OK")
</pallas_src>

<mosaic_0001>
module attributes {stable_mosaic.version = 11 : i64} {
  func.func @_gru_stacked_kernel(%arg0: memref<2x8x4xf32, #tpu.memory_space<vmem>>, %arg1: memref<32x224xbf16, #tpu.memory_space<vmem>>, %arg2: memref<32x224xbf16, #tpu.memory_space<vmem>>, %arg3: memref<4x160xbf16, #tpu.memory_space<vmem>>, %arg4: memref<1x224xf32, #tpu.memory_space<vmem>>, %arg5: memref<1x160xf32, #tpu.memory_space<vmem>>, %arg6: memref<1x96xf32, #tpu.memory_space<vmem>>, %arg7: memref<32x16xf32, #tpu.memory_space<vmem>>, %arg8: memref<1x16xf32, #tpu.memory_space<vmem>>, %arg9: memref<2x16xf32, #tpu.memory_space<vmem>>) attributes {dimension_semantics = [], scalar_prefetch = 0 : i64, scratch_operands = 0 : i64, tpu.core_type = #tpu.core_type<tc>} {
    %c0 = arith.constant 0 : index
    %c0_0 = arith.constant 0 : index
    %0 = vector.load %arg1[%c0, %c0_0] : memref<32x224xbf16, #tpu.memory_space<vmem>>, vector<32x224xbf16>
    %c0_1 = arith.constant 0 : index
    %c0_2 = arith.constant 0 : index
    %1 = vector.load %arg2[%c0_1, %c0_2] : memref<32x224xbf16, #tpu.memory_space<vmem>>, vector<32x224xbf16>
    %c0_3 = arith.constant 0 : index
    %c0_4 = arith.constant 0 : index
    %2 = vector.load %arg3[%c0_3, %c0_4] : memref<4x160xbf16, #tpu.memory_space<vmem>>, vector<4x160xbf16>
    %c0_5 = arith.constant 0 : index
    %c0_6 = arith.constant 0 : index
    %3 = vector.load %arg4[%c0_5, %c0_6] : memref<1x224xf32, #tpu.memory_space<vmem>>, vector<1x224xf32>
    %4 = vector.shape_cast %3 : vector<1x224xf32> to vector<1x224xf32>
    %5 = vector.broadcast %4 : vector<1x224xf32> to vector<2x224xf32>
    %c0_7 = arith.constant 0 : index
    %c0_8 = arith.constant 0 : index
    %6 = vector.load %arg5[%c0_7, %c0_8] : memref<1x160xf32, #tpu.memory_space<vmem>>, vector<1x160xf32>
    %7 = vector.shape_cast %6 : vector<1x160xf32> to vector<1x160xf32>
    %8 = vector.broadcast %7 : vector<1x160xf32> to vector<2x160xf32>
    %c0_9 = arith.constant 0 : index
    %c0_10 = arith.constant 0 : index
    %c0_11 = arith.constant 0 : index
    %9 = vector.load %arg0[%c0_9, %c0_10, %c0_11] : memref<2x8x4xf32, #tpu.memory_space<vmem>>, vector<2x1x4xf32>
    %10 = vector.shape_cast %9 : vector<2x1x4xf32> to vector<2x4xf32>
    %11 = arith.truncf %10 : vector<2x4xf32> to vector<2x4xbf16>
    %cst = arith.constant dense<0.000000e+00> : vector<2x160xf32>
    %12 = tpu.matmul %11, %2, %cst {dimension_numbers = #tpu.dot_dimension_numbers<[1], [0], [0], [1], [0, 0, 1, 1], [], []>} : vector<2x4xbf16>, vector<4x160xbf16>, vector<2x160xf32> -> vector<2x160xf32>
    %13 = arith.addf %12, %8 : vector<2x160xf32>
    %14 = vector.extract_strided_slice %13 {offsets = [0, 64], sizes = [2, 64], strides = [1, 1]} : vector<2x160xf32> to vector<2x64xf32>
    %c0_12 = arith.constant 0 : index
    %c0_13 = arith.constant 0 : index
    %15 = vector.load %arg6[%c0_12, %c0_13] : memref<1x96xf32, #tpu.memory_space<vmem>>, vector<1x64xf32>
    %16 = vector.broadcast %15 : vector<1x64xf32> to vector<2x64xf32>
    %17 = arith.addf %14, %16 : vector<2x64xf32>
    %18 = arith.negf %17 : vector<2x64xf32>
    %19 = math.exp %18 : vector<2x64xf32>
    %cst_14 = arith.constant 1.000000e+00 : f32
    %20 = vector.broadcast %cst_14 : f32 to vector<2x64xf32>
    %21 = arith.addf %20, %19 : vector<2x64xf32>
    %22 = arith.divf %20, %21 : vector<2x64xf32>
    %23 = vector.extract_strided_slice %22 {offsets = [0, 0], sizes = [2, 32], strides = [1, 1]} : vector<2x64xf32> to vector<2x32xf32>
    %24 = vector.extract_strided_slice %22 {offsets = [0, 32], sizes = [2, 32], strides = [1, 1]} : vector<2x64xf32> to vector<2x32xf32>
    %25 = vector.extract_strided_slice %13 {offsets = [0, 128], sizes = [2, 32], strides = [1, 1]} : vector<2x160xf32> to vector<2x32xf32>
    %c0_15 = arith.constant 0 : index
    %c64 = arith.constant 64 : index
    %26 = vector.load %arg6[%c0_15, %c64] : memref<1x96xf32, #tpu.memory_space<vmem>>, vector<1x32xf32>
    %cst_16 = arith.constant 0.000000e+00 : f32
    %27 = vector.broadcast %cst_16 : f32 to vector<2x32xf32>
    %cst_17 = arith.constant 0.000000e+00 : f32
    %28 = vector.broadcast %cst_17 : f32 to vector<2x32xf32>
    %29 = vector.broadcast %26 : vector<1x32xf32> to vector<2x32xf32>
    %30 = arith.mulf %23, %29 : vector<2x32xf32>
    %31 = arith.addf %25, %30 : vector<2x32xf32>
    %32 = math.tanh %31 : vector<2x32xf32>
    %33 = arith.subf %27, %32 : vector<2x32xf32>
    %34 = arith.mulf %24, %33 : vector<2x32xf32>
    %35 = arith.addf %32, %34 : vector<2x32xf32>
    %36 = arith.truncf %35 : vector<2x32xf32> to vector<2x32xbf16>
    %cst_18 = arith.constant dense<0.000000e+00> : vector<2x224xf32>
    %37 = tpu.matmul %36, %0, %cst_18 {dimension_numbers = #tpu.dot_dimension_numbers<[1], [0], [0], [1], [0, 0, 1, 1], [], []>} : vector<2x32xbf16>, vector<32x224xbf16>, vector<2x224xf32> -> vector<2x224xf32>
    %38 = arith.truncf %28 : vector<2x32xf32> to vector<2x32xbf16>
    %cst_19 = arith.constant dense<0.000000e+00> : vector<2x224xf32>
    %39 = tpu.matmul %38, %1, %cst_19 {dimension_numbers = #tpu.dot_dimension_numbers<[1], [0], [0], [1], [0, 0, 1, 1], [], []>} : vector<2x32xbf16>, vector<32x224xbf16>, vector<2x224xf32> -> vector<2x224xf32>
    %40 = arith.addf %37, %39 : vector<2x224xf32>
    %41 = arith.addf %40, %5 : vector<2x224xf32>
    %c0_20 = arith.constant 0 : index
    %c1 = arith.constant 1 : index
    %c0_21 = arith.constant 0 : index
    %42 = vector.load %arg0[%c0_20, %c1, %c0_21] : memref<2x8x4xf32, #tpu.memory_space<vmem>>, vector<2x1x4xf32>
    %43 = vector.shape_cast %42 : vector<2x1x4xf32> to vector<2x4xf32>
    %44 = arith.truncf %43 : vector<2x4xf32> to vector<2x4xbf16>
    %cst_22 = arith.constant dense<0.000000e+00> : vector<2x160xf32>
    %45 = tpu.matmul %44, %2, %cst_22 {dimension_numbers = #tpu.dot_dimension_numbers<[1], [0], [0], [1], [0, 0, 1, 1], [], []>} : vector<2x4xbf16>, vector<4x160xbf16>, vector<2x160xf32> -> vector<2x160xf32>
    %46 = arith.addf %45, %8 : vector<2x160xf32>
    %47 = vector.extract_strided_slice %41 {offsets = [0, 0], sizes = [2, 128], strides = [1, 1]} : vector<2x224xf32> to vector<2x128xf32>
    %48 = vector.extract_strided_slice %46 {offsets = [0, 0], sizes = [2, 128], strides = [1, 1]} : vector<2x160xf32> to vector<2x128xf32>
    %49 = arith.addf %47, %48 : vector<2x128xf32>
    %50 = arith.negf %49 : vector<2x128xf32>
    %51 = math.exp %50 : vector<2x128xf32>
    %cst_23 = arith.constant 1.000000e+00 : f32
    %52 = vector.broadcast %cst_23 : f32 to vector<2x128xf32>
    %53 = arith.addf %52, %51 : vector<2x128xf32>
    %54 = arith.divf %52, %53 : vector<2x128xf32>
    %55 = vector.extract_strided_slice %54 {offsets = [0, 0], sizes = [2, 32], strides = [1, 1]} : vector<2x128xf32> to vector<2x32xf32>
    %56 = vector.extract_strided_slice %54 {offsets = [0, 32], sizes = [2, 32], strides = [1, 1]} : vector<2x128xf32> to vector<2x32xf32>
    %57 = vector.extract_strided_slice %41 {offsets = [0, 128], sizes = [2, 32], strides = [1, 1]} : vector<2x224xf32> to vector<2x32xf32>
    %58 = vector.extract_strided_slice %41 {offsets = [0, 160], sizes = [2, 32], strides = [1, 1]} : vector<2x224xf32> to vector<2x32xf32>
    %59 = arith.mulf %55, %58 : vector<2x32xf32>
    %60 = arith.addf %57, %59 : vector<2x32xf32>
    %61 = math.tanh %60 : vector<2x32xf32>
    %62 = arith.subf %28, %61 : vector<2x32xf32>
    %63 = arith.mulf %56, %62 : vector<2x32xf32>
    %64 = arith.addf %61, %63 : vector<2x32xf32>
    %65 = vector.extract_strided_slice %54 {offsets = [0, 64], sizes = [2, 32], strides = [1, 1]} : vector<2x128xf32> to vector<2x32xf32>
    %66 = vector.extract_strided_slice %54 {offsets = [0, 96], sizes = [2, 32], strides = [1, 1]} : vector<2x128xf32> to vector<2x32xf32>
    %67 = vector.extract_strided_slice %41 {offsets = [0, 192], sizes = [2, 32], strides = [1, 1]} : vector<2x224xf32> to vector<2x32xf32>
    %68 = vector.extract_strided_slice %46 {offsets = [0, 128], sizes = [2, 32], strides = [1, 1]} : vector<2x160xf32> to vector<2x32xf32>
    %69 = arith.mulf %65, %67 : vector<2x32xf32>
    %70 = arith.addf %68, %69 : vector<2x32xf32>
    %71 = math.tanh %70 : vector<2x32xf32>
    %72 = arith.subf %35, %71 : vector<2x32xf32>
    %73 = arith.mulf %66, %72 : vector<2x32xf32>
    %74 = arith.addf %71, %73 : vector<2x32xf32>
    %75 = arith.truncf %74 : vector<2x32xf32> to vector<2x32xbf16>
    %cst_24 = arith.constant dense<0.000000e+00> : vector<2x224xf32>
    %76 = tpu.matmul %75, %0, %cst_24 {dimension_numbers = #tpu.dot_dimension_numbers<[1], [0], [0], [1], [0, 0, 1, 1], [], []>} : vector<2x32xbf16>, vector<32x224xbf16>, vector<2x224xf32> -> vector<2x224xf32>
    %77 = arith.truncf %64 : vector<2x32xf32> to vector<2x32xbf16>
    %cst_25 = arith.constant dense<0.000000e+00> : vector<2x224xf32>
    %78 = tpu.matmul %77, %1, %cst_25 {dimension_numbers = #tpu.dot_dimension_numbers<[1], [0], [0], [1], [0, 0, 1, 1], [], []>} : vector<2x32xbf16>, vector<32x224xbf16>, vector<2x224xf32> -> vector<2x224xf32>
    %79 = arith.addf %76, %78 : vector<2x224xf32>
    %80 = arith.addf %79, %5 : vector<2x224xf32>
    %c0_26 = arith.constant 0 : index
    %c2 = arith.constant 2 : index
    %c0_27 = arith.constant 0 : index
    %81 = vector.load %arg0[%c0_26, %c2, %c0_27] : memref<2x8x4xf32, #tpu.memory_space<vmem>>, vector<2x1x4xf32>
    %82 = vector.shape_cast %81 : vector<2x1x4xf32> to vector<2x4xf32>
    %83 = arith.truncf %82 : vector<2x4xf32> to vector<2x4xbf16>
    %cst_28 = arith.constant dense<0.000000e+00> : vector<2x160xf32>
    %84 = tpu.matmul %83, %2, %cst_28 {dimension_numbers = #tpu.dot_dimension_numbers<[1], [0], [0], [1], [0, 0, 1, 1], [], []>} : vector<2x4xbf16>, vector<4x160xbf16>, vector<2x160xf32> -> vector<2x160xf32>
    %85 = arith.addf %84, %8 : vector<2x160xf32>
    %86 = vector.extract_strided_slice %80 {offsets = [0, 0], sizes = [2, 128], strides = [1, 1]} : vector<2x224xf32> to vector<2x128xf32>
    %87 = vector.extract_strided_slice %85 {offsets = [0, 0], sizes = [2, 128], strides = [1, 1]} : vector<2x160xf32> to vector<2x128xf32>
    %88 = arith.addf %86, %87 : vector<2x128xf32>
    %89 = arith.negf %88 : vector<2x128xf32>
    %90 = math.exp %89 : vector<2x128xf32>
    %cst_29 = arith.constant 1.000000e+00 : f32
    %91 = vector.broadcast %cst_29 : f32 to vector<2x128xf32>
    %92 = arith.addf %91, %90 : vector<2x128xf32>
    %93 = arith.divf %91, %92 : vector<2x128xf32>
    %94 = vector.extract_strided_slice %93 {offsets = [0, 0], sizes = [2, 32], strides = [1, 1]} : vector<2x128xf32> to vector<2x32xf32>
    %95 = vector.extract_strided_slice %93 {offsets = [0, 32], sizes = [2, 32], strides = [1, 1]} : vector<2x128xf32> to vector<2x32xf32>
    %96 = vector.extract_strided_slice %80 {offsets = [0, 128], sizes = [2, 32], strides = [1, 1]} : vector<2x224xf32> to vector<2x32xf32>
    %97 = vector.extract_strided_slice %80 {offsets = [0, 160], sizes = [2, 32], strides = [1, 1]} : vector<2x224xf32> to vector<2x32xf32>
    %98 = arith.mulf %94, %97 : vector<2x32xf32>
    %99 = arith.addf %96, %98 : vector<2x32xf32>
    %100 = math.tanh %99 : vector<2x32xf32>
    %101 = arith.subf %64, %100 : vector<2x32xf32>
    %102 = arith.mulf %95, %101 : vector<2x32xf32>
    %103 = arith.addf %100, %102 : vector<2x32xf32>
    %104 = vector.extract_strided_slice %93 {offsets = [0, 64], sizes = [2, 32], strides = [1, 1]} : vector<2x128xf32> to vector<2x32xf32>
    %105 = vector.extract_strided_slice %93 {offsets = [0, 96], sizes = [2, 32], strides = [1, 1]} : vector<2x128xf32> to vector<2x32xf32>
    %106 = vector.extract_strided_slice %80 {offsets = [0, 192], sizes = [2, 32], strides = [1, 1]} : vector<2x224xf32> to vector<2x32xf32>
    %107 = vector.extract_strided_slice %85 {offsets = [0, 128], sizes = [2, 32], strides = [1, 1]} : vector<2x160xf32> to vector<2x32xf32>
    %108 = arith.mulf %104, %106 : vector<2x32xf32>
    %109 = arith.addf %107, %108 : vector<2x32xf32>
    %110 = math.tanh %109 : vector<2x32xf32>
    %111 = arith.subf %74, %110 : vector<2x32xf32>
    %112 = arith.mulf %105, %111 : vector<2x32xf32>
    %113 = arith.addf %110, %112 : vector<2x32xf32>
    %114 = arith.truncf %113 : vector<2x32xf32> to vector<2x32xbf16>
    %cst_30 = arith.constant dense<0.000000e+00> : vector<2x224xf32>
    %115 = tpu.matmul %114, %0, %cst_30 {dimension_numbers = #tpu.dot_dimension_numbers<[1], [0], [0], [1], [0, 0, 1, 1], [], []>} : vector<2x32xbf16>, vector<32x224xbf16>, vector<2x224xf32> -> vector<2x224xf32>
    %116 = arith.truncf %103 : vector<2x32xf32> to vector<2x32xbf16>
    %cst_31 = arith.constant dense<0.000000e+00> : vector<2x224xf32>
    %117 = tpu.matmul %116, %1, %cst_31 {dimension_numbers = #tpu.dot_dimension_numbers<[1], [0], [0], [1], [0, 0, 1, 1], [], []>} : vector<2x32xbf16>, vector<32x224xbf16>, vector<2x224xf32> -> vector<2x224xf32>
    %118 = arith.addf %115, %117 : vector<2x224xf32>
    %119 = arith.addf %118, %5 : vector<2x224xf32>
    %c0_32 = arith.constant 0 : index
    %c3 = arith.constant 3 : index
    %c0_33 = arith.constant 0 : index
    %120 = vector.load %arg0[%c0_32, %c3, %c0_33] : memref<2x8x4xf32, #tpu.memory_space<vmem>>, vector<2x1x4xf32>
    %121 = vector.shape_cast %120 : vector<2x1x4xf32> to vector<2x4xf32>
    %122 = arith.truncf %121 : vector<2x4xf32> to vector<2x4xbf16>
    %cst_34 = arith.constant dense<0.000000e+00> : vector<2x160xf32>
    %123 = tpu.matmul %122, %2, %cst_34 {dimension_numbers = #tpu.dot_dimension_numbers<[1], [0], [0], [1], [0, 0, 1, 1], [], []>} : vector<2x4xbf16>, vector<4x160xbf16>, vector<2x160xf32> -> vector<2x160xf32>
    %124 = arith.addf %123, %8 : vector<2x160xf32>
    %125 = vector.extract_strided_slice %119 {offsets = [0, 0], sizes = [2, 128], strides = [1, 1]} : vector<2x224xf32> to vector<2x128xf32>
    %126 = vector.extract_strided_slice %124 {offsets = [0, 0], sizes = [2, 128], strides = [1, 1]} : vector<2x160xf32> to vector<2x128xf32>
    %127 = arith.addf %125, %126 : vector<2x128xf32>
    %128 = arith.negf %127 : vector<2x128xf32>
    %129 = math.exp %128 : vector<2x128xf32>
    %cst_35 = arith.constant 1.000000e+00 : f32
    %130 = vector.broadcast %cst_35 : f32 to vector<2x128xf32>
    %131 = arith.addf %130, %129 : vector<2x128xf32>
    %132 = arith.divf %130, %131 : vector<2x128xf32>
    %133 = vector.extract_strided_slice %132 {offsets = [0, 0], sizes = [2, 32], strides = [1, 1]} : vector<2x128xf32> to vector<2x32xf32>
    %134 = vector.extract_strided_slice %132 {offsets = [0, 32], sizes = [2, 32], strides = [1, 1]} : vector<2x128xf32> to vector<2x32xf32>
    %135 = vector.extract_strided_slice %119 {offsets = [0, 128], sizes = [2, 32], strides = [1, 1]} : vector<2x224xf32> to vector<2x32xf32>
    %136 = vector.extract_strided_slice %119 {offsets = [0, 160], sizes = [2, 32], strides = [1, 1]} : vector<2x224xf32> to vector<2x32xf32>
    %137 = arith.mulf %133, %136 : vector<2x32xf32>
    %138 = arith.addf %135, %137 : vector<2x32xf32>
    %139 = math.tanh %138 : vector<2x32xf32>
    %140 = arith.subf %103, %139 : vector<2x32xf32>
    %141 = arith.mulf %134, %140 : vector<2x32xf32>
    %142 = arith.addf %139, %141 : vector<2x32xf32>
    %143 = vector.extract_strided_slice %132 {offsets = [0, 64], sizes = [2, 32], strides = [1, 1]} : vector<2x128xf32> to vector<2x32xf32>
    %144 = vector.extract_strided_slice %132 {offsets = [0, 96], sizes = [2, 32], strides = [1, 1]} : vector<2x128xf32> to vector<2x32xf32>
    %145 = vector.extract_strided_slice %119 {offsets = [0, 192], sizes = [2, 32], strides = [1, 1]} : vector<2x224xf32> to vector<2x32xf32>
    %146 = vector.extract_strided_slice %124 {offsets = [0, 128], sizes = [2, 32], strides = [1, 1]} : vector<2x160xf32> to vector<2x32xf32>
    %147 = arith.mulf %143, %145 : vector<2x32xf32>
    %148 = arith.addf %146, %147 : vector<2x32xf32>
    %149 = math.tanh %148 : vector<2x32xf32>
    %150 = arith.subf %113, %149 : vector<2x32xf32>
    %151 = arith.mulf %144, %150 : vector<2x32xf32>
    %152 = arith.addf %149, %151 : vector<2x32xf32>
    %153 = arith.truncf %152 : vector<2x32xf32> to vector<2x32xbf16>
    %cst_36 = arith.constant dense<0.000000e+00> : vector<2x224xf32>
    %154 = tpu.matmul %153, %0, %cst_36 {dimension_numbers = #tpu.dot_dimension_numbers<[1], [0], [0], [1], [0, 0, 1, 1], [], []>} : vector<2x32xbf16>, vector<32x224xbf16>, vector<2x224xf32> -> vector<2x224xf32>
    %155 = arith.truncf %142 : vector<2x32xf32> to vector<2x32xbf16>
    %cst_37 = arith.constant dense<0.000000e+00> : vector<2x224xf32>
    %156 = tpu.matmul %155, %1, %cst_37 {dimension_numbers = #tpu.dot_dimension_numbers<[1], [0], [0], [1], [0, 0, 1, 1], [], []>} : vector<2x32xbf16>, vector<32x224xbf16>, vector<2x224xf32> -> vector<2x224xf32>
    %157 = arith.addf %154, %156 : vector<2x224xf32>
    %158 = arith.addf %157, %5 : vector<2x224xf32>
    %c0_38 = arith.constant 0 : index
    %c4 = arith.constant 4 : index
    %c0_39 = arith.constant 0 : index
    %159 = vector.load %arg0[%c0_38, %c4, %c0_39] : memref<2x8x4xf32, #tpu.memory_space<vmem>>, vector<2x1x4xf32>
    %160 = vector.shape_cast %159 : vector<2x1x4xf32> to vector<2x4xf32>
    %161 = arith.truncf %160 : vector<2x4xf32> to vector<2x4xbf16>
    %cst_40 = arith.constant dense<0.000000e+00> : vector<2x160xf32>
    %162 = tpu.matmul %161, %2, %cst_40 {dimension_numbers = #tpu.dot_dimension_numbers<[1], [0], [0], [1], [0, 0, 1, 1], [], []>} : vector<2x4xbf16>, vector<4x160xbf16>, vector<2x160xf32> -> vector<2x160xf32>
    %163 = arith.addf %162, %8 : vector<2x160xf32>
    %164 = vector.extract_strided_slice %158 {offsets = [0, 0], sizes = [2, 128], strides = [1, 1]} : vector<2x224xf32> to vector<2x128xf32>
    %165 = vector.extract_strided_slice %163 {offsets = [0, 0], sizes = [2, 128], strides = [1, 1]} : vector<2x160xf32> to vector<2x128xf32>
    %166 = arith.addf %164, %165 : vector<2x128xf32>
    %167 = arith.negf %166 : vector<2x128xf32>
    %168 = math.exp %167 : vector<2x128xf32>
    %cst_41 = arith.constant 1.000000e+00 : f32
    %169 = vector.broadcast %cst_41 : f32 to vector<2x128xf32>
    %170 = arith.addf %169, %168 : vector<2x128xf32>
    %171 = arith.divf %169, %170 : vector<2x128xf32>
    %172 = vector.extract_strided_slice %171 {offsets = [0, 0], sizes = [2, 32], strides = [1, 1]} : vector<2x128xf32> to vector<2x32xf32>
    %173 = vector.extract_strided_slice %171 {offsets = [0, 32], sizes = [2, 32], strides = [1, 1]} : vector<2x128xf32> to vector<2x32xf32>
    %174 = vector.extract_strided_slice %158 {offsets = [0, 128], sizes = [2, 32], strides = [1, 1]} : vector<2x224xf32> to vector<2x32xf32>
    %175 = vector.extract_strided_slice %158 {offsets = [0, 160], sizes = [2, 32], strides = [1, 1]} : vector<2x224xf32> to vector<2x32xf32>
    %176 = arith.mulf %172, %175 : vector<2x32xf32>
    %177 = arith.addf %174, %176 : vector<2x32xf32>
    %178 = math.tanh %177 : vector<2x32xf32>
    %179 = arith.subf %142, %178 : vector<2x32xf32>
    %180 = arith.mulf %173, %179 : vector<2x32xf32>
    %181 = arith.addf %178, %180 : vector<2x32xf32>
    %182 = vector.extract_strided_slice %171 {offsets = [0, 64], sizes = [2, 32], strides = [1, 1]} : vector<2x128xf32> to vector<2x32xf32>
    %183 = vector.extract_strided_slice %171 {offsets = [0, 96], sizes = [2, 32], strides = [1, 1]} : vector<2x128xf32> to vector<2x32xf32>
    %184 = vector.extract_strided_slice %158 {offsets = [0, 192], sizes = [2, 32], strides = [1, 1]} : vector<2x224xf32> to vector<2x32xf32>
    %185 = vector.extract_strided_slice %163 {offsets = [0, 128], sizes = [2, 32], strides = [1, 1]} : vector<2x160xf32> to vector<2x32xf32>
    %186 = arith.mulf %182, %184 : vector<2x32xf32>
    %187 = arith.addf %185, %186 : vector<2x32xf32>
    %188 = math.tanh %187 : vector<2x32xf32>
    %189 = arith.subf %152, %188 : vector<2x32xf32>
    %190 = arith.mulf %183, %189 : vector<2x32xf32>
    %191 = arith.addf %188, %190 : vector<2x32xf32>
    %192 = arith.truncf %191 : vector<2x32xf32> to vector<2x32xbf16>
    %cst_42 = arith.constant dense<0.000000e+00> : vector<2x224xf32>
    %193 = tpu.matmul %192, %0, %cst_42 {dimension_numbers = #tpu.dot_dimension_numbers<[1], [0], [0], [1], [0, 0, 1, 1], [], []>} : vector<2x32xbf16>, vector<32x224xbf16>, vector<2x224xf32> -> vector<2x224xf32>
    %194 = arith.truncf %181 : vector<2x32xf32> to vector<2x32xbf16>
    %cst_43 = arith.constant dense<0.000000e+00> : vector<2x224xf32>
    %195 = tpu.matmul %194, %1, %cst_43 {dimension_numbers = #tpu.dot_dimension_numbers<[1], [0], [0], [1], [0, 0, 1, 1], [], []>} : vector<2x32xbf16>, vector<32x224xbf16>, vector<2x224xf32> -> vector<2x224xf32>
    %196 = arith.addf %193, %195 : vector<2x224xf32>
    %197 = arith.addf %196, %5 : vector<2x224xf32>
    %c0_44 = arith.constant 0 : index
    %c5 = arith.constant 5 : index
    %c0_45 = arith.constant 0 : index
    %198 = vector.load %arg0[%c0_44, %c5, %c0_45] : memref<2x8x4xf32, #tpu.memory_space<vmem>>, vector<2x1x4xf32>
    %199 = vector.shape_cast %198 : vector<2x1x4xf32> to vector<2x4xf32>
    %200 = arith.truncf %199 : vector<2x4xf32> to vector<2x4xbf16>
    %cst_46 = arith.constant dense<0.000000e+00> : vector<2x160xf32>
    %201 = tpu.matmul %200, %2, %cst_46 {dimension_numbers = #tpu.dot_dimension_numbers<[1], [0], [0], [1], [0, 0, 1, 1], [], []>} : vector<2x4xbf16>, vector<4x160xbf16>, vector<2x160xf32> -> vector<2x160xf32>
    %202 = arith.addf %201, %8 : vector<2x160xf32>
    %203 = vector.extract_strided_slice %197 {offsets = [0, 0], sizes = [2, 128], strides = [1, 1]} : vector<2x224xf32> to vector<2x128xf32>
    %204 = vector.extract_strided_slice %202 {offsets = [0, 0], sizes = [2, 128], strides = [1, 1]} : vector<2x160xf32> to vector<2x128xf32>
    %205 = arith.addf %203, %204 : vector<2x128xf32>
    %206 = arith.negf %205 : vector<2x128xf32>
    %207 = math.exp %206 : vector<2x128xf32>
    %cst_47 = arith.constant 1.000000e+00 : f32
    %208 = vector.broadcast %cst_47 : f32 to vector<2x128xf32>
    %209 = arith.addf %208, %207 : vector<2x128xf32>
    %210 = arith.divf %208, %209 : vector<2x128xf32>
    %211 = vector.extract_strided_slice %210 {offsets = [0, 0], sizes = [2, 32], strides = [1, 1]} : vector<2x128xf32> to vector<2x32xf32>
    %212 = vector.extract_strided_slice %210 {offsets = [0, 32], sizes = [2, 32], strides = [1, 1]} : vector<2x128xf32> to vector<2x32xf32>
    %213 = vector.extract_strided_slice %197 {offsets = [0, 128], sizes = [2, 32], strides = [1, 1]} : vector<2x224xf32> to vector<2x32xf32>
    %214 = vector.extract_strided_slice %197 {offsets = [0, 160], sizes = [2, 32], strides = [1, 1]} : vector<2x224xf32> to vector<2x32xf32>
    %215 = arith.mulf %211, %214 : vector<2x32xf32>
    %216 = arith.addf %213, %215 : vector<2x32xf32>
    %217 = math.tanh %216 : vector<2x32xf32>
    %218 = arith.subf %181, %217 : vector<2x32xf32>
    %219 = arith.mulf %212, %218 : vector<2x32xf32>
    %220 = arith.addf %217, %219 : vector<2x32xf32>
    %221 = vector.extract_strided_slice %210 {offsets = [0, 64], sizes = [2, 32], strides = [1, 1]} : vector<2x128xf32> to vector<2x32xf32>
    %222 = vector.extract_strided_slice %210 {offsets = [0, 96], sizes = [2, 32], strides = [1, 1]} : vector<2x128xf32> to vector<2x32xf32>
    %223 = vector.extract_strided_slice %197 {offsets = [0, 192], sizes = [2, 32], strides = [1, 1]} : vector<2x224xf32> to vector<2x32xf32>
    %224 = vector.extract_strided_slice %202 {offsets = [0, 128], sizes = [2, 32], strides = [1, 1]} : vector<2x160xf32> to vector<2x32xf32>
    %225 = arith.mulf %221, %223 : vector<2x32xf32>
    %226 = arith.addf %224, %225 : vector<2x32xf32>
    %227 = math.tanh %226 : vector<2x32xf32>
    %228 = arith.subf %191, %227 : vector<2x32xf32>
    %229 = arith.mulf %222, %228 : vector<2x32xf32>
    %230 = arith.addf %227, %229 : vector<2x32xf32>
    %231 = arith.truncf %230 : vector<2x32xf32> to vector<2x32xbf16>
    %cst_48 = arith.constant dense<0.000000e+00> : vector<2x224xf32>
    %232 = tpu.matmul %231, %0, %cst_48 {dimension_numbers = #tpu.dot_dimension_numbers<[1], [0], [0], [1], [0, 0, 1, 1], [], []>} : vector<2x32xbf16>, vector<32x224xbf16>, vector<2x224xf32> -> vector<2x224xf32>
    %233 = arith.truncf %220 : vector<2x32xf32> to vector<2x32xbf16>
    %cst_49 = arith.constant dense<0.000000e+00> : vector<2x224xf32>
    %234 = tpu.matmul %233, %1, %cst_49 {dimension_numbers = #tpu.dot_dimension_numbers<[1], [0], [0], [1], [0, 0, 1, 1], [], []>} : vector<2x32xbf16>, vector<32x224xbf16>, vector<2x224xf32> -> vector<2x224xf32>
    %235 = arith.addf %232, %234 : vector<2x224xf32>
    %236 = arith.addf %235, %5 : vector<2x224xf32>
    %c0_50 = arith.constant 0 : index
    %c6 = arith.constant 6 : index
    %c0_51 = arith.constant 0 : index
    %237 = vector.load %arg0[%c0_50, %c6, %c0_51] : memref<2x8x4xf32, #tpu.memory_space<vmem>>, vector<2x1x4xf32>
    %238 = vector.shape_cast %237 : vector<2x1x4xf32> to vector<2x4xf32>
    %239 = arith.truncf %238 : vector<2x4xf32> to vector<2x4xbf16>
    %cst_52 = arith.constant dense<0.000000e+00> : vector<2x160xf32>
    %240 = tpu.matmul %239, %2, %cst_52 {dimension_numbers = #tpu.dot_dimension_numbers<[1], [0], [0], [1], [0, 0, 1, 1], [], []>} : vector<2x4xbf16>, vector<4x160xbf16>, vector<2x160xf32> -> vector<2x160xf32>
    %241 = arith.addf %240, %8 : vector<2x160xf32>
    %242 = vector.extract_strided_slice %236 {offsets = [0, 0], sizes = [2, 128], strides = [1, 1]} : vector<2x224xf32> to vector<2x128xf32>
    %243 = vector.extract_strided_slice %241 {offsets = [0, 0], sizes = [2, 128], strides = [1, 1]} : vector<2x160xf32> to vector<2x128xf32>
    %244 = arith.addf %242, %243 : vector<2x128xf32>
    %245 = arith.negf %244 : vector<2x128xf32>
    %246 = math.exp %245 : vector<2x128xf32>
    %cst_53 = arith.constant 1.000000e+00 : f32
    %247 = vector.broadcast %cst_53 : f32 to vector<2x128xf32>
    %248 = arith.addf %247, %246 : vector<2x128xf32>
    %249 = arith.divf %247, %248 : vector<2x128xf32>
    %250 = vector.extract_strided_slice %249 {offsets = [0, 0], sizes = [2, 32], strides = [1, 1]} : vector<2x128xf32> to vector<2x32xf32>
    %251 = vector.extract_strided_slice %249 {offsets = [0, 32], sizes = [2, 32], strides = [1, 1]} : vector<2x128xf32> to vector<2x32xf32>
    %252 = vector.extract_strided_slice %236 {offsets = [0, 128], sizes = [2, 32], strides = [1, 1]} : vector<2x224xf32> to vector<2x32xf32>
    %253 = vector.extract_strided_slice %236 {offsets = [0, 160], sizes = [2, 32], strides = [1, 1]} : vector<2x224xf32> to vector<2x32xf32>
    %254 = arith.mulf %250, %253 : vector<2x32xf32>
    %255 = arith.addf %252, %254 : vector<2x32xf32>
    %256 = math.tanh %255 : vector<2x32xf32>
    %257 = arith.subf %220, %256 : vector<2x32xf32>
    %258 = arith.mulf %251, %257 : vector<2x32xf32>
    %259 = arith.addf %256, %258 : vector<2x32xf32>
    %260 = vector.extract_strided_slice %249 {offsets = [0, 64], sizes = [2, 32], strides = [1, 1]} : vector<2x128xf32> to vector<2x32xf32>
    %261 = vector.extract_strided_slice %249 {offsets = [0, 96], sizes = [2, 32], strides = [1, 1]} : vector<2x128xf32> to vector<2x32xf32>
    %262 = vector.extract_strided_slice %236 {offsets = [0, 192], sizes = [2, 32], strides = [1, 1]} : vector<2x224xf32> to vector<2x32xf32>
    %263 = vector.extract_strided_slice %241 {offsets = [0, 128], sizes = [2, 32], strides = [1, 1]} : vector<2x160xf32> to vector<2x32xf32>
    %264 = arith.mulf %260, %262 : vector<2x32xf32>
    %265 = arith.addf %263, %264 : vector<2x32xf32>
    %266 = math.tanh %265 : vector<2x32xf32>
    %267 = arith.subf %230, %266 : vector<2x32xf32>
    %268 = arith.mulf %261, %267 : vector<2x32xf32>
    %269 = arith.addf %266, %268 : vector<2x32xf32>
    %270 = arith.truncf %269 : vector<2x32xf32> to vector<2x32xbf16>
    %cst_54 = arith.constant dense<0.000000e+00> : vector<2x224xf32>
    %271 = tpu.matmul %270, %0, %cst_54 {dimension_numbers = #tpu.dot_dimension_numbers<[1], [0], [0], [1], [0, 0, 1, 1], [], []>} : vector<2x32xbf16>, vector<32x224xbf16>, vector<2x224xf32> -> vector<2x224xf32>
    %272 = arith.truncf %259 : vector<2x32xf32> to vector<2x32xbf16>
    %cst_55 = arith.constant dense<0.000000e+00> : vector<2x224xf32>
    %273 = tpu.matmul %272, %1, %cst_55 {dimension_numbers = #tpu.dot_dimension_numbers<[1], [0], [0], [1], [0, 0, 1, 1], [], []>} : vector<2x32xbf16>, vector<32x224xbf16>, vector<2x224xf32> -> vector<2x224xf32>
    %274 = arith.addf %271, %273 : vector<2x224xf32>
    %275 = arith.addf %274, %5 : vector<2x224xf32>
    %c0_56 = arith.constant 0 : index
    %c7 = arith.constant 7 : index
    %c0_57 = arith.constant 0 : index
    %276 = vector.load %arg0[%c0_56, %c7, %c0_57] : memref<2x8x4xf32, #tpu.memory_space<vmem>>, vector<2x1x4xf32>
    %277 = vector.shape_cast %276 : vector<2x1x4xf32> to vector<2x4xf32>
    %278 = arith.truncf %277 : vector<2x4xf32> to vector<2x4xbf16>
    %cst_58 = arith.constant dense<0.000000e+00> : vector<2x160xf32>
    %279 = tpu.matmul %278, %2, %cst_58 {dimension_numbers = #tpu.dot_dimension_numbers<[1], [0], [0], [1], [0, 0, 1, 1], [], []>} : vector<2x4xbf16>, vector<4x160xbf16>, vector<2x160xf32> -> vector<2x160xf32>
    %280 = arith.addf %279, %8 : vector<2x160xf32>
    %281 = vector.extract_strided_slice %275 {offsets = [0, 0], sizes = [2, 128], strides = [1, 1]} : vector<2x224xf32> to vector<2x128xf32>
    %282 = vector.extract_strided_slice %280 {offsets = [0, 0], sizes = [2, 128], strides = [1, 1]} : vector<2x160xf32> to vector<2x128xf32>
    %283 = arith.addf %281, %282 : vector<2x128xf32>
    %284 = arith.negf %283 : vector<2x128xf32>
    %285 = math.exp %284 : vector<2x128xf32>
    %cst_59 = arith.constant 1.000000e+00 : f32
    %286 = vector.broadcast %cst_59 : f32 to vector<2x128xf32>
    %287 = arith.addf %286, %285 : vector<2x128xf32>
    %288 = arith.divf %286, %287 : vector<2x128xf32>
    %289 = vector.extract_strided_slice %288 {offsets = [0, 0], sizes = [2, 32], strides = [1, 1]} : vector<2x128xf32> to vector<2x32xf32>
    %290 = vector.extract_strided_slice %288 {offsets = [0, 32], sizes = [2, 32], strides = [1, 1]} : vector<2x128xf32> to vector<2x32xf32>
    %291 = vector.extract_strided_slice %275 {offsets = [0, 128], sizes = [2, 32], strides = [1, 1]} : vector<2x224xf32> to vector<2x32xf32>
    %292 = vector.extract_strided_slice %275 {offsets = [0, 160], sizes = [2, 32], strides = [1, 1]} : vector<2x224xf32> to vector<2x32xf32>
    %293 = arith.mulf %289, %292 : vector<2x32xf32>
    %294 = arith.addf %291, %293 : vector<2x32xf32>
    %295 = math.tanh %294 : vector<2x32xf32>
    %296 = arith.subf %259, %295 : vector<2x32xf32>
    %297 = arith.mulf %290, %296 : vector<2x32xf32>
    %298 = arith.addf %295, %297 : vector<2x32xf32>
    %299 = vector.extract_strided_slice %288 {offsets = [0, 64], sizes = [2, 32], strides = [1, 1]} : vector<2x128xf32> to vector<2x32xf32>
    %300 = vector.extract_strided_slice %288 {offsets = [0, 96], sizes = [2, 32], strides = [1, 1]} : vector<2x128xf32> to vector<2x32xf32>
    %301 = vector.extract_strided_slice %275 {offsets = [0, 192], sizes = [2, 32], strides = [1, 1]} : vector<2x224xf32> to vector<2x32xf32>
    %302 = vector.extract_strided_slice %280 {offsets = [0, 128], sizes = [2, 32], strides = [1, 1]} : vector<2x160xf32> to vector<2x32xf32>
    %303 = arith.mulf %299, %301 : vector<2x32xf32>
    %304 = arith.addf %302, %303 : vector<2x32xf32>
    %305 = math.tanh %304 : vector<2x32xf32>
    %306 = arith.subf %269, %305 : vector<2x32xf32>
    %307 = arith.mulf %300, %306 : vector<2x32xf32>
    %308 = arith.addf %305, %307 : vector<2x32xf32>
    %309 = arith.truncf %308 : vector<2x32xf32> to vector<2x32xbf16>
    %cst_60 = arith.constant dense<0.000000e+00> : vector<2x224xf32>
    %310 = tpu.matmul %309, %0, %cst_60 {dimension_numbers = #tpu.dot_dimension_numbers<[1], [0], [0], [1], [0, 0, 1, 1], [], []>} : vector<2x32xbf16>, vector<32x224xbf16>, vector<2x224xf32> -> vector<2x224xf32>
    %311 = arith.truncf %298 : vector<2x32xf32> to vector<2x32xbf16>
    %cst_61 = arith.constant dense<0.000000e+00> : vector<2x224xf32>
    %312 = tpu.matmul %311, %1, %cst_61 {dimension_numbers = #tpu.dot_dimension_numbers<[1], [0], [0], [1], [0, 0, 1, 1], [], []>} : vector<2x32xbf16>, vector<32x224xbf16>, vector<2x224xf32> -> vector<2x224xf32>
    %313 = arith.addf %310, %312 : vector<2x224xf32>
    %314 = arith.addf %313, %5 : vector<2x224xf32>
    %315 = vector.extract_strided_slice %314 {offsets = [0, 0], sizes = [2, 128], strides = [1, 1]} : vector<2x224xf32> to vector<2x128xf32>
    %316 = arith.negf %315 : vector<2x128xf32>
    %317 = math.exp %316 : vector<2x128xf32>
    %cst_62 = arith.constant 1.000000e+00 : f32
    %318 = vector.broadcast %cst_62 : f32 to vector<2x128xf32>
    %319 = arith.addf %318, %317 : vector<2x128xf32>
    %320 = arith.divf %318, %319 : vector<2x128xf32>
    %321 = vector.extract_strided_slice %320 {offsets = [0, 0], sizes = [2, 32], strides = [1, 1]} : vector<2x128xf32> to vector<2x32xf32>
    %322 = vector.extract_strided_slice %320 {offsets = [0, 32], sizes = [2, 32], strides = [1, 1]} : vector<2x128xf32> to vector<2x32xf32>
    %323 = vector.extract_strided_slice %314 {offsets = [0, 128], sizes = [2, 32], strides = [1, 1]} : vector<2x224xf32> to vector<2x32xf32>
    %324 = vector.extract_strided_slice %314 {offsets = [0, 160], sizes = [2, 32], strides = [1, 1]} : vector<2x224xf32> to vector<2x32xf32>
    %325 = arith.mulf %321, %324 : vector<2x32xf32>
    %326 = arith.addf %323, %325 : vector<2x32xf32>
    %327 = math.tanh %326 : vector<2x32xf32>
    %328 = arith.subf %298, %327 : vector<2x32xf32>
    %329 = arith.mulf %322, %328 : vector<2x32xf32>
    %330 = arith.addf %327, %329 : vector<2x32xf32>
    %c0_63 = arith.constant 0 : index
    %c0_64 = arith.constant 0 : index
    %331 = vector.load %arg7[%c0_63, %c0_64] : memref<32x16xf32, #tpu.memory_space<vmem>>, vector<32x16xf32>
    %cst_65 = arith.constant dense<0.000000e+00> : vector<2x16xf32>
    %332 = tpu.matmul %330, %331, %cst_65 {dimension_numbers = #tpu.dot_dimension_numbers<[1], [0], [0], [1], [0, 0, 1, 1], [], []>} : vector<2x32xf32>, vector<32x16xf32>, vector<2x16xf32> -> vector<2x16xf32>
    %c0_66 = arith.constant 0 : index
    %c0_67 = arith.constant 0 : index
    %333 = vector.load %arg8[%c0_66, %c0_67] : memref<1x16xf32, #tpu.memory_space<vmem>>, vector<1x16xf32>
    %334 = vector.broadcast %333 : vector<1x16xf32> to vector<2x16xf32>
    %335 = arith.addf %332, %334 : vector<2x16xf32>
    %c0_68 = arith.constant 0 : index
    %c0_69 = arith.constant 0 : index
    %336 = vector.load %arg9[%c0_68, %c0_69] : memref<2x16xf32, #tpu.memory_space<vmem>>, vector<2x16xf32>
    tpu.vector_store %arg9[%c0_68, %c0_69], %335 {strides = array<i32>} : memref<2x16xf32, #tpu.memory_space<vmem>>, vector<2x16xf32>,
    return
  }
}

</mosaic_0001>

<llo_original>
// kernel: gru_stacked_forward.1
$region0: #{gru_stacked_forward.1}
  #allocation0 [shape = 'u32[]', space=smem, size = 0x4, offset = 0x4, fixed_abs, tag = 'smem constant byte address 0x4 - core index']
  #allocation1 [shape = 'u32[72,128]{1,0:T(1,128)}', space=vmem, size = 0x9000, scoped, tag = 'internal scratch']
  %s0 = inlined_call_operand.vmem [shape: f32[2,8,4], index: 0, kind: input, shape index: {}]
  %s1 = inlined_call_operand.vmem [shape: bf16[32,224], index: 1, kind: input, shape index: {}]
  %s2 = inlined_call_operand.hbm [shape: bf16[32,224], index: 2, kind: input, shape index: {}]
  %s3 = inlined_call_operand.vmem [shape: bf16[4,160], index: 3, kind: input, shape index: {}]
  %s4 = inlined_call_operand.vmem [shape: f32[1,224], index: 4, kind: input, shape index: {}]
  %s5 = inlined_call_operand.vmem [shape: f32[1,160], index: 5, kind: input, shape index: {}]
  %s6 = inlined_call_operand.vmem [shape: f32[1,96], index: 6, kind: input, shape index: {}]
  %s7 = inlined_call_operand.vmem [shape: f32[32,16], index: 7, kind: input, shape index: {}]
  %s8 = inlined_call_operand.vmem [shape: f32[1,16], index: 8, kind: input, shape index: {}]
  %s9 = inlined_call_operand.vmem [shape: f32[2,16], index: 9, kind: output, shape index: {}]
  %s10 = sld [smem:[#allocation0]]
  $region50: #{gru_stacked_forward.1} parent=0
    _
  %s12 = ssub.s32 1, %s10
  %s13 = scalar_select 0, %s12, %s10
  $region1: #{gru_stacked_forward.1} parent=0
    #allocation2 [shape = 'u8[16384]{0}', space=vmem, size = 0x4000, scoped, tag = 'input window, operand 2, single buffered']
    #allocation3 [shape = 's32[1]{0}', space=sflag, size = 0x4, scoped, tag = 'scoped memory for gru_stacked_forward.1']
    %14 = vsyncpa [#allocation3], 0
    // Predicated region
    $region2: #{gru_stacked_forward.1} parent=1 // pred_check
      _
    $region3: #{gru_stacked_forward.1} parent=1 // pred_check_branch
      %16 = sbr.rel (0) target = $region5
    $region4: #{gru_stacked_forward.1} parent=1 // pred_region
      _
    $region5: #{gru_stacked_forward.1} parent=1 // pred_fallthru
      _
    // Predicated region
    $region6: #{gru_stacked_forward.1} parent=1 // pred_check
      _
    $region7: #{gru_stacked_forward.1} parent=1 // pred_check_branch
      %18 = sbr.rel (0) target = $region9
    $region8: #{gru_stacked_forward.1} parent=1 // pred_region
      _
    $region9: #{gru_stacked_forward.1} parent=1 // pred_fallthru
      _
    // Predicated region
    $region10: #{gru_stacked_forward.1} parent=1 // pred_check
      _
    $region11: #{gru_stacked_forward.1} parent=1 // pred_check_branch
      %20 = sbr.rel (0) target = $region13
    $region12: #{gru_stacked_forward.1} parent=1 // pred_region
      %22 = vsyncadd [#allocation3], 0
      %s23 = sshll.u32 %s2, 4
      %s24 = int_to_ptr.hbm [resolvable:$true] %s23
      %s25 = sshll.u32 [#allocation2], 4
      %s26 = int_to_ptr.vmem [resolvable:$true] %s25
      %31 = dma.hbm_to_vmem [thread:$0]  %s24, 512, %s26, [#allocation3], 128, 128, 8
    $region13: #{gru_stacked_forward.1} parent=1 // pred_fallthru
      _
    // Predicated region
    $region14: #{gru_stacked_forward.1} parent=1 // pred_check
      _
    $region15: #{gru_stacked_forward.1} parent=1 // pred_check_branch
      %33 = sbr.rel (0) target = $region17
    $region16: #{gru_stacked_forward.1} parent=1 // pred_region
      _
    $region17: #{gru_stacked_forward.1} parent=1 // pred_fallthru
      _
    // Predicated region
    $region18: #{gru_stacked_forward.1} parent=1 // pred_check
      _
    $region19: #{gru_stacked_forward.1} parent=1 // pred_check_branch
      %35 = sbr.rel (0) target = $region21
    $region20: #{gru_stacked_forward.1} parent=1 // pred_region
      _
    $region21: #{gru_stacked_forward.1} parent=1 // pred_fallthru
      _
    // Predicated region
    $region22: #{gru_stacked_forward.1} parent=1 // pred_check
      _
    $region23: #{gru_stacked_forward.1} parent=1 // pred_check_branch
      %37 = sbr.rel (0) target = $region25
    $region24: #{gru_stacked_forward.1} parent=1 // pred_region
      _
    $region25: #{gru_stacked_forward.1} parent=1 // pred_fallthru
      _
    // Predicated region
    $region26: #{gru_stacked_forward.1} parent=1 // pred_check
      _
    $region27: #{gru_stacked_forward.1} parent=1 // pred_check_branch
      %39 = sbr.rel (0) target = $region29
    $region28: #{gru_stacked_forward.1} parent=1 // pred_region
      _
    $region29: #{gru_stacked_forward.1} parent=1 // pred_fallthru
      _
    // Predicated region
    $region30: #{gru_stacked_forward.1} parent=1 // pred_check
      _
    $region31: #{gru_stacked_forward.1} parent=1 // pred_check_branch
      %41 = sbr.rel (0) target = $region33
    $region32: #{gru_stacked_forward.1} parent=1 // pred_region
      _
    $region33: #{gru_stacked_forward.1} parent=1 // pred_fallthru
      _
    // Predicated region
    $region34: #{gru_stacked_forward.1} parent=1 // pred_check
      _
    $region35: #{gru_stacked_forward.1} parent=1 // pred_check_branch
      %43 = sbr.rel (0) target = $region37
    $region36: #{gru_stacked_forward.1} parent=1 // pred_region
      _
    $region37: #{gru_stacked_forward.1} parent=1 // pred_fallthru
      _
    // Predicated region
    $region38: #{gru_stacked_forward.1} parent=1 // pred_check
      _
    $region39: #{gru_stacked_forward.1} parent=1 // pred_check_branch
      %45 = sbr.rel (0) target = $region41
    $region40: #{gru_stacked_forward.1} parent=1 // pred_region
      %47 = dma.done [#allocation3], 512
    $region41: #{gru_stacked_forward.1} parent=1 // pred_fallthru
      _
    %v49 = vld [vmem:[%s1] sm:$0xff]
    %v50 = vld [vmem:[%s1 + $0x8] sm:$0xff]
    %v51 = vld [vmem:[%s1 + $0x10] sm:$0xff]
    %v52 = vld [vmem:[%s1 + $0x18] sm:$0xff]
    %v53 = vld [vmem:[#allocation2] sm:$0xff]
    %v54 = vld [vmem:[#allocation2 + $0x8] sm:$0xff]
    %v55 = vld [vmem:[#allocation2 + $0x10] sm:$0xff]
    %v56 = vld [vmem:[#allocation2 + $0x18] sm:$0xff]
    %v57 = vld [vmem:[%s3] sm:$0xf]
    %v58 = vld [vmem:[%s4] sm:$0x3]
    %v60 = vperm.slane %v58, 0
    %v61 = vperm.slane %v58, 1
    %v64 = vld [vmem:[%s5] sm:$0x3]
    %v66 = vperm.slane %v64, 0
    %v67 = vperm.slane %v64, 1
    %v70 = vld [vmem:[%s0] sm:$0x1]
    %v71 = vld [vmem:[%s0 + $0x8] sm:$0x1]
    %v72 = vpack.c.bf16 %v70, %v70
    %v73 = vpack.c.bf16 %v71, %v71
    %v76 = vunpack.c.l.b16 %v72
    %v77 = vunpack.c.l.b16 %v73
    %v78 = vrot.slane %v77, 7
    %vm79 = vcmask 1041409
    %v80 = vsel %vm79, %v78, %v76
    %v81 = vpack.c.b16 %v80, %v80
    %83 = vst [vmem:[#allocation1] ss:$4 sm:$0xff] %v57
    %v84 = vld.sshfl [vmem:[#allocation1] sm:$0xff pattern:$0x73625140]
    %v85 = vld.sshfl [vmem:[#allocation1 + $0x8] sm:$0xff pattern:$0x73625140]
    %vm86 = vcmask 31744
    %v88 = vsel %vm86, %v81, 0
    %vm90 = vcmask 1041408
    %v91 = vsel %vm90, %v84, 0
    %v93 = vsel %vm90, %v85, 0
    %95 = vmatpush.bf16.msra.mxu0 0
    %96 = vmatpush.bf16.msra.mxu0 0
    %97 = vmatpush.bf16.msra.mxu0 0
    %98 = vmatpush.bf16.msra.mxu0 0
    %99 = vmatpush.bf16.msra.mxu0 0
    %100 = vmatpush.bf16.msra.mxu0 0
    %101 = vmatpush.bf16.msra.mxu0 0
    %102 = vmatpush.bf16.msra.mxu0 %v91
    %103 = vmatmul.bf16.gmra.mxu0 %v88
    %v104 = vpop.f32.mrf.mxu0
    %v105 = vadd.f32 %v66, %v104
    %v106 = vpop.f32.mrf.mxu0
    %107 = vdwg.mxu0
    %108 = vmatpush.bf16.msra.mxu0 0
    %109 = vmatpush.bf16.msra.mxu0 0
    %110 = vmatpush.bf16.msra.mxu0 0
    %111 = vmatpush.bf16.msra.mxu0 0
    %112 = vmatpush.bf16.msra.mxu0 0
    %113 = vmatpush.bf16.msra.mxu0 0
    %114 = vmatpush.bf16.msra.mxu0 0
    %115 = vmatpush.bf16.msra.mxu0 %v93
    %116 = vmatmul.bf16.gmra.mxu0 %v88
    %v117 = vpop.f32.mrf.mxu0
    %v118 = vadd.f32 %v67, %v117
    %v119 = vpop.f32.mrf.mxu0
    %120 = vdwg.mxu0
    %v121 = vld [vmem:[%s6] sm:$0x1]
    %v123 = vperm.slane %v121, 0
    %124 = vrot.lane.b32.xlu0 %v123, 64
    %v125 = vpop.permute.xlu0 %124
    %v127 = vadd.f32 %v105, %v125
    %v128 = vxor.u32 %v127, 2147483648
    %v129 = vmul.f32 %v128, 1.442695
    %v130 = vpow.pop %v129
    %v131 = vadd.f32 %v130, 1.0
    %v132 = vrcp.pop %v131
    %v133 = vmul.f32 %v131, %v132
    %v134 = vsub.f32 1.0, %v133
    %v135 = vmul.f32 %v132, %v134
    %v136 = vadd.f32 %v132, %v135
    %vm137 = vweird.f32 %v131
    %vm138 = vweird.f32 %v132
    %vm139 = vmor %vm137, %vm138
    %v140 = vsel %vm139, %v132, %v136
    %v141 = vand.u32 2147483647, %v131
    %vm142 = vcmp.eq.f32.partialorder %v141, 8.507059e+37
    %v143 = vand.u32 %v131, 2147483648
    %v144 = vor.u32 1.1754944e-38, %v143
    %v145 = vsel %vm142, %v144, %v140
    %v146 = vmul.f32 1.0, %v145
    %v148 = vmul.f32 %v146, %v123
    %150 = vrot.lane.b32.xlu0 %v148, 64
    %v151 = vpop.permute.xlu0 %150
    %v153 = vadd.f32 %v118, %v151
    %v154 = vtanh.pop %v153
    %v155 = vsub.f32 0.0, %v154
    %157 = vrot.lane.b32.xlu0 %v155, 96
    %v158 = vpop.permute.xlu0 %157
    %v160 = vmul.f32 %v146, %v158
    %162 = vrot.lane.b32.xlu0 %v160, 32
    %v163 = vpop.permute.xlu0 %162
    %v165 = vadd.f32 %v154, %v163
    %v166 = vpack.c.bf16 %v165, %v165
    %v171 = vunpack.c.l.b16 %v53
    %v172 = vunpack.c.h.b16 %v53
    %v173 = vunpack.c.l.b16 %v54
    %v174 = vunpack.c.h.b16 %v54
    %v175 = vunpack.c.l.b16 %v55
    %v176 = vunpack.c.h.b16 %v55
    %v177 = vunpack.c.l.b16 %v56
    %v178 = vunpack.c.h.b16 %v56
    %v179 = vpack.c.b16 %v173, %v171
    %v180 = vpack.c.b16 %v174, %v172
    %v181 = vpack.c.b16 %v177, %v175
    %v182 = vpack.c.b16 %v178, %v176
    %vm187 = vcmask 261120
    %v189 = vsel %vm187, 0, 0
    %191 = vmatpush.bf16.msra.mxu0 0
    %192 = vmatpush.bf16.msra.mxu0 0
    %193 = vmatpush.bf16.msra.mxu0 0
    %194 = vmatpush.bf16.msra.mxu0 0
    %195 = vmatpush.bf16.msra.mxu0 0
    %196 = vmatpush.bf16.msra.mxu0 0
    %197 = vmatpush.bf16.msra.mxu0 %v181
    %198 = vmatpush.bf16.msra.mxu0 %v179
    %199 = vmatmul.bf16.gmra.mxu0 %v189
    %v200 = vpop.f32.mrf.mxu0
    %v201 = vadd.f32 0.0, %v200
    %v202 = vpop.f32.mrf.mxu0
    %203 = vdwg.mxu0
    %204 = vmatpush.bf16.msra.mxu0 0
    %205 = vmatpush.bf16.msra.mxu0 0
    %206 = vmatpush.bf16.msra.mxu0 0
    %207 = vmatpush.bf16.msra.mxu0 0
    %208 = vmatpush.bf16.msra.mxu0 0
    %209 = vmatpush.bf16.msra.mxu0 0
    %210 = vmatpush.bf16.msra.mxu0 %v182
    %211 = vmatpush.bf16.msra.mxu0 %v180
    %212 = vmatmul.bf16.gmra.mxu0 %v189
    %v213 = vpop.f32.mrf.mxu0
    %v214 = vadd.f32 0.0, %v213
    %v215 = vpop.f32.mrf.mxu0
    %216 = vdwg.mxu0
    %v221 = vunpack.c.l.b16 %v49
    %v222 = vunpack.c.h.b16 %v49
    %v223 = vunpack.c.l.b16 %v50
    %v224 = vunpack.c.h.b16 %v50
    %v225 = vunpack.c.l.b16 %v51
    %v226 = vunpack.c.h.b16 %v51
    %v227 = vunpack.c.l.b16 %v52
    %v228 = vunpack.c.h.b16 %v52
    %v229 = vpack.c.b16 %v223, %v221
    %v230 = vpack.c.b16 %v224, %v222
    %v231 = vpack.c.b16 %v227, %v225
    %v232 = vpack.c.b16 %v228, %v226
    %v238 = vsel %vm187, %v166, 0
    %240 = vmatpush.bf16.msra.mxu0 0
    %241 = vmatpush.bf16.msra.mxu0 0
    %242 = vmatpush.bf16.msra.mxu0 0
    %243 = vmatpush.bf16.msra.mxu0 0
    %244 = vmatpush.bf16.msra.mxu0 0
    %245 = vmatpush.bf16.msra.mxu0 0
    %246 = vmatpush.bf16.msra.mxu0 %v231
    %247 = vmatpush.bf16.msra.mxu0 %v229
    %248 = vmatmul.bf16.gmra.mxu0 %v238
    %v249 = vpop.f32.mrf.mxu0
    %v250 = vadd.f32 %v201, %v249
    %v251 = vpop.f32.mrf.mxu0
    %252 = vdwg.mxu0
    %253 = vmatpush.bf16.msra.mxu0 0
    %254 = vmatpush.bf16.msra.mxu0 0
    %255 = vmatpush.bf16.msra.mxu0 0
    %256 = vmatpush.bf16.msra.mxu0 0
    %257 = vmatpush.bf16.msra.mxu0 0
    %258 = vmatpush.bf16.msra.mxu0 0
    %259 = vmatpush.bf16.msra.mxu0 %v232
    %260 = vmatpush.bf16.msra.mxu0 %v230
    %261 = vmatmul.bf16.gmra.mxu0 %v238
    %v262 = vpop.f32.mrf.mxu0
    %v263 = vadd.f32 %v214, %v262
    %v264 = vpop.f32.mrf.mxu0
    %265 = vdwg.mxu0
    %v266 = vadd.f32 %v250, %v60
    %v267 = vadd.f32 %v263, %v61
    %v268 = vld [vmem:[%s0 + $0x1] sm:$0x1]
    %v269 = vld [vmem:[%s0 + $0x9] sm:$0x1]
    %v270 = vpack.c.bf16 %v268, %v268
    %v271 = vpack.c.bf16 %v269, %v269
    %v274 = vunpack.c.l.b16 %v270
    %v275 = vunpack.c.l.b16 %v271
    %v276 = vrot.slane %v275, 7
    %v277 = vsel %vm79, %v276, %v274
    %v278 = vpack.c.b16 %v277, %v277
    %279 = vst [vmem:[#allocation1] ss:$4 sm:$0xff] %v57
    %v280 = vld.sshfl [vmem:[#allocation1] sm:$0xff pattern:$0x73625140]
    %v281 = vld.sshfl [vmem:[#allocation1 + $0x8] sm:$0xff pattern:$0x73625140]
    %v283 = vsel %vm86, %v278, 0
    %v285 = vsel %vm90, %v280, 0
    %v287 = vsel %vm90, %v281, 0
    %289 = vmatpush.bf16.msra.mxu0 0
    %290 = vmatpush.bf16.msra.mxu0 0
    %291 = vmatpush.bf16.msra.mxu0 0
    %292 = vmatpush.bf16.msra.mxu0 0
    %293 = vmatpush.bf16.msra.mxu0 0
    %294 = vmatpush.bf16.msra.mxu0 0
    %295 = vmatpush.bf16.msra.mxu0 0
    %296 = vmatpush.bf16.msra.mxu0 %v285
    %297 = vmatmul.bf16.gmra.mxu0 %v283
    %v298 = vpop.f32.mrf.mxu0
    %v299 = vadd.f32 %v66, %v298
    %v300 = vpop.f32.mrf.mxu0
    %301 = vdwg.mxu0
    %302 = vmatpush.bf16.msra.mxu0 0
    %303 = vmatpush.bf16.msra.mxu0 0
    %304 = vmatpush.bf16.msra.mxu0 0
    %305 = vmatpush.bf16.msra.mxu0 0
    %306 = vmatpush.bf16.msra.mxu0 0
    %307 = vmatpush.bf16.msra.mxu0 0
    %308 = vmatpush.bf16.msra.mxu0 0
    %309 = vmatpush.bf16.msra.mxu0 %v287
    %310 = vmatmul.bf16.gmra.mxu0 %v283
    %v311 = vpop.f32.mrf.mxu0
    %v312 = vadd.f32 %v67, %v311
    %v313 = vpop.f32.mrf.mxu0
    %314 = vdwg.mxu0
    %v315 = vadd.f32 %v266, %v299
    %v316 = vxor.u32 %v315, 2147483648
    %v317 = vmul.f32 %v316, 1.442695
    %v318 = vpow.pop %v317
    %v319 = vadd.f32 %v318, 1.0
    %v320 = vrcp.pop %v319
    %v321 = vmul.f32 %v319, %v320
    %v322 = vsub.f32 1.0, %v321
    %v323 = vmul.f32 %v320, %v322
    %v324 = vadd.f32 %v320, %v323
    %vm325 = vweird.f32 %v319
    %vm326 = vweird.f32 %v320
    %vm327 = vmor %vm325, %vm326
    %v328 = vsel %vm327, %v320, %v324
    %v329 = vand.u32 2147483647, %v319
    %vm330 = vcmp.eq.f32.partialorder %v329, 8.507059e+37
    %v331 = vand.u32 %v319, 2147483648
    %v332 = vor.u32 1.1754944e-38, %v331
    %v333 = vsel %vm330, %v332, %v328
    %v334 = vmul.f32 1.0, %v333
    %336 = vrot.lane.b32.xlu0 %v267, 96
    %v337 = vpop.permute.xlu0 %336
    %v339 = vmul.f32 %v334, %v337
    %v340 = vadd.f32 %v267, %v339
    %v341 = vtanh.pop %v340
    %v342 = vsub.f32 0.0, %v341
    %344 = vrot.lane.b32.xlu0 %v342, 32
    %v345 = vpop.permute.xlu0 %344
    %v347 = vmul.f32 %v334, %v345
    %349 = vrot.lane.b32.xlu0 %v347, 96
    %v350 = vpop.permute.xlu0 %349
    %v352 = vadd.f32 %v341, %v350
    %v353 = vmul.f32 %v334, %v267
    %355 = vrot.lane.b32.xlu0 %v353, 64
    %v356 = vpop.permute.xlu0 %355
    %v358 = vadd.f32 %v312, %v356
    %v359 = vtanh.pop %v358
    %v360 = vsub.f32 %v165, %v359
    %362 = vrot.lane.b32.xlu0 %v360, 96
    %v363 = vpop.permute.xlu0 %362
    %v365 = vmul.f32 %v334, %v363
    %367 = vrot.lane.b32.xlu0 %v365, 32
    %v368 = vpop.permute.xlu0 %367
    %v370 = vadd.f32 %v359, %v368
    %v371 = vpack.c.bf16 %v370, %v370
    %v372 = vpack.c.bf16 %v352, %v352
    %v374 = vsel %vm187, %v372, 0
    %376 = vmatpush.bf16.msra.mxu0 0
    %377 = vmatpush.bf16.msra.mxu0 0
    %378 = vmatpush.bf16.msra.mxu0 0
    %379 = vmatpush.bf16.msra.mxu0 0
    %380 = vmatpush.bf16.msra.mxu0 0
    %381 = vmatpush.bf16.msra.mxu0 0
    %382 = vmatpush.bf16.msra.mxu0 %v181
    %383 = vmatpush.bf16.msra.mxu0 %v179
    %384 = vmatmul.bf16.gmra.mxu0 %v374
    %v385 = vpop.f32.mrf.mxu0
    %v386 = vadd.f32 0.0, %v385
    %v387 = vpop.f32.mrf.mxu0
    %388 = vdwg.mxu0
    %389 = vmatpush.bf16.msra.mxu0 0
    %390 = vmatpush.bf16.msra.mxu0 0
    %391 = vmatpush.bf16.msra.mxu0 0
    %392 = vmatpush.bf16.msra.mxu0 0
    %393 = vmatpush.bf16.msra.mxu0 0
    %394 = vmatpush.bf16.msra.mxu0 0
    %395 = vmatpush.bf16.msra.mxu0 %v182
    %396 = vmatpush.bf16.msra.mxu0 %v180
    %397 = vmatmul.bf16.gmra.mxu0 %v374
    %v398 = vpop.f32.mrf.mxu0
    %v399 = vadd.f32 0.0, %v398
    %v400 = vpop.f32.mrf.mxu0
    %401 = vdwg.mxu0
    %v403 = vsel %vm187, %v371, 0
    %405 = vmatpush.bf16.msra.mxu0 0
    %406 = vmatpush.bf16.msra.mxu0 0
    %407 = vmatpush.bf16.msra.mxu0 0
    %408 = vmatpush.bf16.msra.mxu0 0
    %409 = vmatpush.bf16.msra.mxu0 0
    %410 = vmatpush.bf16.msra.mxu0 0
    %411 = vmatpush.bf16.msra.mxu0 %v231
    %412 = vmatpush.bf16.msra.mxu0 %v229
    %413 = vmatmul.bf16.gmra.mxu0 %v403
    %v414 = vpop.f32.mrf.mxu0
    %v415 = vadd.f32 %v386, %v414
    %v416 = vpop.f32.mrf.mxu0
    %417 = vdwg.mxu0
    %418 = vmatpush.bf16.msra.mxu0 0
    %419 = vmatpush.bf16.msra.mxu0 0
    %420 = vmatpush.bf16.msra.mxu0 0
    %421 = vmatpush.bf16.msra.mxu0 0
    %422 = vmatpush.bf16.msra.mxu0 0
    %423 = vmatpush.bf16.msra.mxu0 0
    %424 = vmatpush.bf16.msra.mxu0 %v232
    %425 = vmatpush.bf16.msra.mxu0 %v230
    %426 = vmatmul.bf16.gmra.mxu0 %v403
    %v427 = vpop.f32.mrf.mxu0
    %v428 = vadd.f32 %v399, %v427
    %v429 = vpop.f32.mrf.mxu0
    %430 = vdwg.mxu0
    %v431 = vadd.f32 %v415, %v60
    %v432 = vadd.f32 %v428, %v61
    %v433 = vld [vmem:[%s0 + $0x2] sm:$0x1]
    %v434 = vld [vmem:[%s0 + $0xa] sm:$0x1]
    %v435 = vpack.c.bf16 %v433, %v433
    %v436 = vpack.c.bf16 %v434, %v434
    %v439 = vunpack.c.l.b16 %v435
    %v440 = vunpack.c.l.b16 %v436
    %v441 = vrot.slane %v440, 7
    %v442 = vsel %vm79, %v441, %v439
    %v443 = vpack.c.b16 %v442, %v442
    %444 = vst [vmem:[#allocation1] ss:$4 sm:$0xff] %v57
    %v445 = vld.sshfl [vmem:[#allocation1] sm:$0xff pattern:$0x73625140]
    %v446 = vld.sshfl [vmem:[#allocation1 + $0x8] sm:$0xff pattern:$0x73625140]
    %v448 = vsel %vm86, %v443, 0
    %v450 = vsel %vm90, %v445, 0
    %v452 = vsel %vm90, %v446, 0
    %454 = vmatpush.bf16.msra.mxu0 0
    %455 = vmatpush.bf16.msra.mxu0 0
    %456 = vmatpush.bf16.msra.mxu0 0
    %457 = vmatpush.bf16.msra.mxu0 0
    %458 = vmatpush.bf16.msra.mxu0 0
    %459 = vmatpush.bf16.msra.mxu0 0
    %460 = vmatpush.bf16.msra.mxu0 0
    %461 = vmatpush.bf16.msra.mxu0 %v450
    %462 = vmatmul.bf16.gmra.mxu0 %v448
    %v463 = vpop.f32.mrf.mxu0
    %v464 = vadd.f32 %v66, %v463
    %v465 = vpop.f32.mrf.mxu0
    %466 = vdwg.mxu0
    %467 = vmatpush.bf16.msra.mxu0 0
    %468 = vmatpush.bf16.msra.mxu0 0
    %469 = vmatpush.bf16.msra.mxu0 0
    %470 = vmatpush.bf16.msra.mxu0 0
    %471 = vmatpush.bf16.msra.mxu0 0
    %472 = vmatpush.bf16.msra.mxu0 0
    %473 = vmatpush.bf16.msra.mxu0 0
    %474 = vmatpush.bf16.msra.mxu0 %v452
    %475 = vmatmul.bf16.gmra.mxu0 %v448
    %v476 = vpop.f32.mrf.mxu0
    %v477 = vadd.f32 %v67, %v476
    %v478 = vpop.f32.mrf.mxu0
    %479 = vdwg.mxu0
    %v480 = vadd.f32 %v431, %v464
    %v481 = vxor.u32 %v480, 2147483648
    %v482 = vmul.f32 %v481, 1.442695
    %v483 = vpow.pop %v482
    %v484 = vadd.f32 %v483, 1.0
    %v485 = vrcp.pop %v484
    %v486 = vmul.f32 %v484, %v485
    %v487 = vsub.f32 1.0, %v486
    %v488 = vmul.f32 %v485, %v487
    %v489 = vadd.f32 %v485, %v488
    %vm490 = vweird.f32 %v484
    %vm491 = vweird.f32 %v485
    %vm492 = vmor %vm490, %vm491
    %v493 = vsel %vm492, %v485, %v489
    %v494 = vand.u32 2147483647, %v484
    %vm495 = vcmp.eq.f32.partialorder %v494, 8.507059e+37
    %v496 = vand.u32 %v484, 2147483648
    %v497 = vor.u32 1.1754944e-38, %v496
    %v498 = vsel %vm495, %v497, %v493
    %v499 = vmul.f32 1.0, %v498
    %501 = vrot.lane.b32.xlu0 %v432, 96
    %v502 = vpop.permute.xlu0 %501
    %v504 = vmul.f32 %v499, %v502
    %v505 = vadd.f32 %v432, %v504
    %v506 = vtanh.pop %v505
    %v507 = vsub.f32 %v352, %v506
    %509 = vrot.lane.b32.xlu0 %v507, 32
    %v510 = vpop.permute.xlu0 %509
    %v512 = vmul.f32 %v499, %v510
    %514 = vrot.lane.b32.xlu0 %v512, 96
    %v515 = vpop.permute.xlu0 %514
    %v517 = vadd.f32 %v506, %v515
    %v518 = vmul.f32 %v499, %v432
    %520 = vrot.lane.b32.xlu0 %v518, 64
    %v521 = vpop.permute.xlu0 %520
    %v523 = vadd.f32 %v477, %v521
    %v524 = vtanh.pop %v523
    %v525 = vsub.f32 %v370, %v524
    %527 = vrot.lane.b32.xlu0 %v525, 96
    %v528 = vpop.permute.xlu0 %527
    %v530 = vmul.f32 %v499, %v528
    %532 = vrot.lane.b32.xlu0 %v530, 32
    %v533 = vpop.permute.xlu0 %532
    %v535 = vadd.f32 %v524, %v533
    %v536 = vpack.c.bf16 %v535, %v535
    %v537 = vpack.c.bf16 %v517, %v517
    %v539 = vsel %vm187, %v537, 0
    %541 = vmatpush.bf16.msra.mxu0 0
    %542 = vmatpush.bf16.msra.mxu0 0
    %543 = vmatpush.bf16.msra.mxu0 0
    %544 = vmatpush.bf16.msra.mxu0 0
    %545 = vmatpush.bf16.msra.mxu0 0
    %546 = vmatpush.bf16.msra.mxu0 0
    %547 = vmatpush.bf16.msra.mxu0 %v181
    %548 = vmatpush.bf16.msra.mxu0 %v179
    %549 = vmatmul.bf16.gmra.mxu0 %v539
    %v550 = vpop.f32.mrf.mxu0
    %v551 = vadd.f32 0.0, %v550
    %v552 = vpop.f32.mrf.mxu0
    %553 = vdwg.mxu0
    %554 = vmatpush.bf16.msra.mxu0 0
    %555 = vmatpush.bf16.msra.mxu0 0
    %556 = vmatpush.bf16.msra.mxu0 0
    %557 = vmatpush.bf16.msra.mxu0 0
    %558 = vmatpush.bf16.msra.mxu0 0
    %559 = vmatpush.bf16.msra.mxu0 0
    %560 = vmatpush.bf16.msra.mxu0 %v182
    %561 = vmatpush.bf16.msra.mxu0 %v180
    %562 = vmatmul.bf16.gmra.mxu0 %v539
    %v563 = vpop.f32.mrf.mxu0
    %v564 = vadd.f32 0.0, %v563
    %v565 = vpop.f32.mrf.mxu0
    %566 = vdwg.mxu0
    %v568 = vsel %vm187, %v536, 0
    %570 = vmatpush.bf16.msra.mxu0 0
    %571 = vmatpush.bf16.msra.mxu0 0
    %572 = vmatpush.bf16.msra.mxu0 0
    %573 = vmatpush.bf16.msra.mxu0 0
    %574 = vmatpush.bf16.msra.mxu0 0
    %575 = vmatpush.bf16.msra.mxu0 0
    %576 = vmatpush.bf16.msra.mxu0 %v231
    %577 = vmatpush.bf16.msra.mxu0 %v229
    %578 = vmatmul.bf16.gmra.mxu0 %v568
    %v579 = vpop.f32.mrf.mxu0
    %v580 = vadd.f32 %v551, %v579
    %v581 = vpop.f32.mrf.mxu0
    %582 = vdwg.mxu0
    %583 = vmatpush.bf16.msra.mxu0 0
    %584 = vmatpush.bf16.msra.mxu0 0
    %585 = vmatpush.bf16.msra.mxu0 0
    %586 = vmatpush.bf16.msra.mxu0 0
    %587 = vmatpush.bf16.msra.mxu0 0
    %588 = vmatpush.bf16.msra.mxu0 0
    %589 = vmatpush.bf16.msra.mxu0 %v232
    %590 = vmatpush.bf16.msra.mxu0 %v230
    %591 = vmatmul.bf16.gmra.mxu0 %v568
    %v592 = vpop.f32.mrf.mxu0
    %v593 = vadd.f32 %v564, %v592
    %v594 = vpop.f32.mrf.mxu0
    %595 = vdwg.mxu0
    %v596 = vadd.f32 %v580, %v60
    %v597 = vadd.f32 %v593, %v61
    %v598 = vld [vmem:[%s0 + $0x3] sm:$0x1]
    %v599 = vld [vmem:[%s0 + $0xb] sm:$0x1]
    %v600 = vpack.c.bf16 %v598, %v598
    %v601 = vpack.c.bf16 %v599, %v599
    %v604 = vunpack.c.l.b16 %v600
    %v605 = vunpack.c.l.b16 %v601
    %v606 = vrot.slane %v605, 7
    %v607 = vsel %vm79, %v606, %v604
    %v608 = vpack.c.b16 %v607, %v607
    %609 = vst [vmem:[#allocation1] ss:$4 sm:$0xff] %v57
    %v610 = vld.sshfl [vmem:[#allocation1] sm:$0xff pattern:$0x73625140]
    %v611 = vld.sshfl [vmem:[#allocation1 + $0x8] sm:$0xff pattern:$0x73625140]
    %v613 = vsel %vm86, %v608, 0
    %v615 = vsel %vm90, %v610, 0
    %v617 = vsel %vm90, %v611, 0
    %619 = vmatpush.bf16.msra.mxu0 0
    %620 = vmatpush.bf16.msra.mxu0 0
    %621 = vmatpush.bf16.msra.mxu0 0
    %622 = vmatpush.bf16.msra.mxu0 0
    %623 = vmatpush.bf16.msra.mxu0 0
    %624 = vmatpush.bf16.msra.mxu0 0
    %625 = vmatpush.bf16.msra.mxu0 0
    %626 = vmatpush.bf16.msra.mxu0 %v615
    %627 = vmatmul.bf16.gmra.mxu0 %v613
    %v628 = vpop.f32.mrf.mxu0
    %v629 = vadd.f32 %v66, %v628
    %v630 = vpop.f32.mrf.mxu0
    %631 = vdwg.mxu0
    %632 = vmatpush.bf16.msra.mxu0 0
    %633 = vmatpush.bf16.msra.mxu0 0
    %634 = vmatpush.bf16.msra.mxu0 0
    %635 = vmatpush.bf16.msra.mxu0 0
    %636 = vmatpush.bf16.msra.mxu0 0
    %637 = vmatpush.bf16.msra.mxu0 0
    %638 = vmatpush.bf16.msra.mxu0 0
    %639 = vmatpush.bf16.msra.mxu0 %v617
    %640 = vmatmul.bf16.gmra.mxu0 %v613
    %v641 = vpop.f32.mrf.mxu0
    %v642 = vadd.f32 %v67, %v641
    %v643 = vpop.f32.mrf.mxu0
    %644 = vdwg.mxu0
    %v645 = vadd.f32 %v596, %v629
    %v646 = vxor.u32 %v645, 2147483648
    %v647 = vmul.f32 %v646, 1.442695
    %v648 = vpow.pop %v647
    %v649 = vadd.f32 %v648, 1.0
    %v650 = vrcp.pop %v649
    %v651 = vmul.f32 %v649, %v650
    %v652 = vsub.f32 1.0, %v651
    %v653 = vmul.f32 %v650, %v652
    %v654 = vadd.f32 %v650, %v653
    %vm655 = vweird.f32 %v649
    %vm656 = vweird.f32 %v650
    %vm657 = vmor %vm655, %vm656
    %v658 = vsel %vm657, %v650, %v654
    %v659 = vand.u32 2147483647, %v649
    %vm660 = vcmp.eq.f32.partialorder %v659, 8.507059e+37
    %v661 = vand.u32 %v649, 2147483648
    %v662 = vor.u32 1.1754944e-38, %v661
    %v663 = vsel %vm660, %v662, %v658
    %v664 = vmul.f32 1.0, %v663
    %666 = vrot.lane.b32.xlu0 %v597, 96
    %v667 = vpop.permute.xlu0 %666
    %v669 = vmul.f32 %v664, %v667
    %v670 = vadd.f32 %v597, %v669
    %v671 = vtanh.pop %v670
    %v672 = vsub.f32 %v517, %v671
    %674 = vrot.lane.b32.xlu0 %v672, 32
    %v675 = vpop.permute.xlu0 %674
    %v677 = vmul.f32 %v664, %v675
    %679 = vrot.lane.b32.xlu0 %v677, 96
    %v680 = vpop.permute.xlu0 %679
    %v682 = vadd.f32 %v671, %v680
    %v683 = vmul.f32 %v664, %v597
    %685 = vrot.lane.b32.xlu0 %v683, 64
    %v686 = vpop.permute.xlu0 %685
    %v688 = vadd.f32 %v642, %v686
    %v689 = vtanh.pop %v688
    %v690 = vsub.f32 %v535, %v689
    %692 = vrot.lane.b32.xlu0 %v690, 96
    %v693 = vpop.permute.xlu0 %692
    %v695 = vmul.f32 %v664, %v693
    %697 = vrot.lane.b32.xlu0 %v695, 32
    %v698 = vpop.permute.xlu0 %697
    %v700 = vadd.f32 %v689, %v698
    %v701 = vpack.c.bf16 %v700, %v700
    %v702 = vpack.c.bf16 %v682, %v682
    %v704 = vsel %vm187, %v702, 0
    %706 = vmatpush.bf16.msra.mxu0 0
    %707 = vmatpush.bf16.msra.mxu0 0
    %708 = vmatpush.bf16.msra.mxu0 0
    %709 = vmatpush.bf16.msra.mxu0 0
    %710 = vmatpush.bf16.msra.mxu0 0
    %711 = vmatpush.bf16.msra.mxu0 0
    %712 = vmatpush.bf16.msra.mxu0 %v181
    %713 = vmatpush.bf16.msra.mxu0 %v179
    %714 = vmatmul.bf16.gmra.mxu0 %v704
    %v715 = vpop.f32.mrf.mxu0
    %v716 = vadd.f32 0.0, %v715
    %v717 = vpop.f32.mrf.mxu0
    %718 = vdwg.mxu0
    %719 = vmatpush.bf16.msra.mxu0 0
    %720 = vmatpush.bf16.msra.mxu0 0
    %721 = vmatpush.bf16.msra.mxu0 0
    %722 = vmatpush.bf16.msra.mxu0 0
    %723 = vmatpush.bf16.msra.mxu0 0
    %724 = vmatpush.bf16.msra.mxu0 0
    %725 = vmatpush.bf16.msra.mxu0 %v182
    %726 = vmatpush.bf16.msra.mxu0 %v180
    %727 = vmatmul.bf16.gmra.mxu0 %v704
    %v728 = vpop.f32.mrf.mxu0
    %v729 = vadd.f32 0.0, %v728
    %v730 = vpop.f32.mrf.mxu0
    %731 = vdwg.mxu0
    %v733 = vsel %vm187, %v701, 0
    %735 = vmatpush.bf16.msra.mxu0 0
    %736 = vmatpush.bf16.msra.mxu0 0
    %737 = vmatpush.bf16.msra.mxu0 0
    %738 = vmatpush.bf16.msra.mxu0 0
    %739 = vmatpush.bf16.msra.mxu0 0
    %740 = vmatpush.bf16.msra.mxu0 0
    %741 = vmatpush.bf16.msra.mxu0 %v231
    %742 = vmatpush.bf16.msra.mxu0 %v229
    %743 = vmatmul.bf16.gmra.mxu0 %v733
    %v744 = vpop.f32.mrf.mxu0
    %v745 = vadd.f32 %v716, %v744
    %v746 = vpop.f32.mrf.mxu0
    %747 = vdwg.mxu0
    %748 = vmatpush.bf16.msra.mxu0 0
    %749 = vmatpush.bf16.msra.mxu0 0
    %750 = vmatpush.bf16.msra.mxu0 0
    %751 = vmatpush.bf16.msra.mxu0 0
    %752 = vmatpush.bf16.msra.mxu0 0
    %753 = vmatpush.bf16.msra.mxu0 0
    %754 = vmatpush.bf16.msra.mxu0 %v232
    %755 = vmatpush.bf16.msra.mxu0 %v230
    %756 = vmatmul.bf16.gmra.mxu0 %v733
    %v757 = vpop.f32.mrf.mxu0
    %v758 = vadd.f32 %v729, %v757
    %v759 = vpop.f32.mrf.mxu0
    %760 = vdwg.mxu0
    %v761 = vadd.f32 %v745, %v60
    %v762 = vadd.f32 %v758, %v61
    %v763 = vld [vmem:[%s0 + $0x4] sm:$0x1]
    %v764 = vld [vmem:[%s0 + $0xc] sm:$0x1]
    %v765 = vpack.c.bf16 %v763, %v763
    %v766 = vpack.c.bf16 %v764, %v764
    %v769 = vunpack.c.l.b16 %v765
    %v770 = vunpack.c.l.b16 %v766
    %v771 = vrot.slane %v770, 7
    %v772 = vsel %vm79, %v771, %v769
    %v773 = vpack.c.b16 %v772, %v772
    %774 = vst [vmem:[#allocation1] ss:$4 sm:$0xff] %v57
    %v775 = vld.sshfl [vmem:[#allocation1] sm:$0xff pattern:$0x73625140]
    %v776 = vld.sshfl [vmem:[#allocation1 + $0x8] sm:$0xff pattern:$0x73625140]
    %v778 = vsel %vm86, %v773, 0
    %v780 = vsel %vm90, %v775, 0
    %v782 = vsel %vm90, %v776, 0
    %784 = vmatpush.bf16.msra.mxu0 0
    %785 = vmatpush.bf16.msra.mxu0 0
    %786 = vmatpush.bf16.msra.mxu0 0
    %787 = vmatpush.bf16.msra.mxu0 0
    %788 = vmatpush.bf16.msra.mxu0 0
    %789 = vmatpush.bf16.msra.mxu0 0
    %790 = vmatpush.bf16.msra.mxu0 0
    %791 = vmatpush.bf16.msra.mxu0 %v780
    %792 = vmatmul.bf16.gmra.mxu0 %v778
    %v793 = vpop.f32.mrf.mxu0
    %v794 = vadd.f32 %v66, %v793
    %v795 = vpop.f32.mrf.mxu0
    %796 = vdwg.mxu0
    %797 = vmatpush.bf16.msra.mxu0 0
    %798 = vmatpush.bf16.msra.mxu0 0
    %799 = vmatpush.bf16.msra.mxu0 0
    %800 = vmatpush.bf16.msra.mxu0 0
    %801 = vmatpush.bf16.msra.mxu0 0
    %802 = vmatpush.bf16.msra.mxu0 0
    %803 = vmatpush.bf16.msra.mxu0 0
    %804 = vmatpush.bf16.msra.mxu0 %v782
    %805 = vmatmul.bf16.gmra.mxu0 %v778
    %v806 = vpop.f32.mrf.mxu0
    %v807 = vadd.f32 %v67, %v806
    %v808 = vpop.f32.mrf.mxu0
    %809 = vdwg.mxu0
    %v810 = vadd.f32 %v761, %v794
    %v811 = vxor.u32 %v810, 2147483648
    %v812 = vmul.f32 %v811, 1.442695
    %v813 = vpow.pop %v812
    %v814 = vadd.f32 %v813, 1.0
    %v815 = vrcp.pop %v814
    %v816 = vmul.f32 %v814, %v815
    %v817 = vsub.f32 1.0, %v816
    %v818 = vmul.f32 %v815, %v817
    %v819 = vadd.f32 %v815, %v818
    %vm820 = vweird.f32 %v814
    %vm821 = vweird.f32 %v815
    %vm822 = vmor %vm820, %vm821
    %v823 = vsel %vm822, %v815, %v819
    %v824 = vand.u32 2147483647, %v814
    %vm825 = vcmp.eq.f32.partialorder %v824, 8.507059e+37
    %v826 = vand.u32 %v814, 2147483648
    %v827 = vor.u32 1.1754944e-38, %v826
    %v828 = vsel %vm825, %v827, %v823
    %v829 = vmul.f32 1.0, %v828
    %831 = vrot.lane.b32.xlu0 %v762, 96
    %v832 = vpop.permute.xlu0 %831
    %v834 = vmul.f32 %v829, %v832
    %v835 = vadd.f32 %v762, %v834
    %v836 = vtanh.pop %v835
    %v837 = vsub.f32 %v682, %v836
    %839 = vrot.lane.b32.xlu0 %v837, 32
    %v840 = vpop.permute.xlu0 %839
    %v842 = vmul.f32 %v829, %v840
    %844 = vrot.lane.b32.xlu0 %v842, 96
    %v845 = vpop.permute.xlu0 %844
    %v847 = vadd.f32 %v836, %v845
    %v848 = vmul.f32 %v829, %v762
    %850 = vrot.lane.b32.xlu0 %v848, 64
    %v851 = vpop.permute.xlu0 %850
    %v853 = vadd.f32 %v807, %v851
    %v854 = vtanh.pop %v853
    %v855 = vsub.f32 %v700, %v854
    %857 = vrot.lane.b32.xlu0 %v855, 96
    %v858 = vpop.permute.xlu0 %857
    %v860 = vmul.f32 %v829, %v858
    %862 = vrot.lane.b32.xlu0 %v860, 32
    %v863 = vpop.permute.xlu0 %862
    %v865 = vadd.f32 %v854, %v863
    %v866 = vpack.c.bf16 %v865, %v865
    %v867 = vpack.c.bf16 %v847, %v847
    %v869 = vsel %vm187, %v867, 0
    %871 = vmatpush.bf16.msra.mxu0 0
    %872 = vmatpush.bf16.msra.mxu0 0
    %873 = vmatpush.bf16.msra.mxu0 0
    %874 = vmatpush.bf16.msra.mxu0 0
    %875 = vmatpush.bf16.msra.mxu0 0
    %876 = vmatpush.bf16.msra.mxu0 0
    %877 = vmatpush.bf16.msra.mxu0 %v181
    %878 = vmatpush.bf16.msra.mxu0 %v179
    %879 = vmatmul.bf16.gmra.mxu0 %v869
    %v880 = vpop.f32.mrf.mxu0
    %v881 = vadd.f32 0.0, %v880
    %v882 = vpop.f32.mrf.mxu0
    %883 = vdwg.mxu0
    %884 = vmatpush.bf16.msra.mxu0 0
    %885 = vmatpush.bf16.msra.mxu0 0
    %886 = vmatpush.bf16.msra.mxu0 0
    %887 = vmatpush.bf16.msra.mxu0 0
    %888 = vmatpush.bf16.msra.mxu0 0
    %889 = vmatpush.bf16.msra.mxu0 0
    %890 = vmatpush.bf16.msra.mxu0 %v182
    %891 = vmatpush.bf16.msra.mxu0 %v180
    %892 = vmatmul.bf16.gmra.mxu0 %v869
    %v893 = vpop.f32.mrf.mxu0
    %v894 = vadd.f32 0.0, %v893
    %v895 = vpop.f32.mrf.mxu0
    %896 = vdwg.mxu0
    %v898 = vsel %vm187, %v866, 0
    %900 = vmatpush.bf16.msra.mxu0 0
    %901 = vmatpush.bf16.msra.mxu0 0
    %902 = vmatpush.bf16.msra.mxu0 0
    %903 = vmatpush.bf16.msra.mxu0 0
    %904 = vmatpush.bf16.msra.mxu0 0
    %905 = vmatpush.bf16.msra.mxu0 0
    %906 = vmatpush.bf16.msra.mxu0 %v231
    %907 = vmatpush.bf16.msra.mxu0 %v229
    %908 = vmatmul.bf16.gmra.mxu0 %v898
    %v909 = vpop.f32.mrf.mxu0
    %v910 = vadd.f32 %v881, %v909
    %v911 = vpop.f32.mrf.mxu0
    %912 = vdwg.mxu0
    %913 = vmatpush.bf16.msra.mxu0 0
    %914 = vmatpush.bf16.msra.mxu0 0
    %915 = vmatpush.bf16.msra.mxu0 0
    %916 = vmatpush.bf16.msra.mxu0 0
    %917 = vmatpush.bf16.msra.mxu0 0
    %918 = vmatpush.bf16.msra.mxu0 0
    %919 = vmatpush.bf16.msra.mxu0 %v232
    %920 = vmatpush.bf16.msra.mxu0 %v230
    %921 = vmatmul.bf16.gmra.mxu0 %v898
    %v922 = vpop.f32.mrf.mxu0
    %v923 = vadd.f32 %v894, %v922
    %v924 = vpop.f32.mrf.mxu0
    %925 = vdwg.mxu0
    %v926 = vadd.f32 %v910, %v60
    %v927 = vadd.f32 %v923, %v61
    %v928 = vld [vmem:[%s0 + $0x5] sm:$0x1]
    %v929 = vld [vmem:[%s0 + $0xd] sm:$0x1]
    %v930 = vpack.c.bf16 %v928, %v928
    %v931 = vpack.c.bf16 %v929, %v929
    %v934 = vunpack.c.l.b16 %v930
    %v935 = vunpack.c.l.b16 %v931
    %v936 = vrot.slane %v935, 7
    %v937 = vsel %vm79, %v936, %v934
    %v938 = vpack.c.b16 %v937, %v937
    %939 = vst [vmem:[#allocation1] ss:$4 sm:$0xff] %v57
    %v940 = vld.sshfl [vmem:[#allocation1] sm:$0xff pattern:$0x73625140]
    %v941 = vld.sshfl [vmem:[#allocation1 + $0x8] sm:$0xff pattern:$0x73625140]
    %v943 = vsel %vm86, %v938, 0
    %v945 = vsel %vm90, %v940, 0
    %v947 = vsel %vm90, %v941, 0
    %949 = vmatpush.bf16.msra.mxu0 0
    %950 = vmatpush.bf16.msra.mxu0 0
    %951 = vmatpush.bf16.msra.mxu0 0
    %952 = vmatpush.bf16.msra.mxu0 0
    %953 = vmatpush.bf16.msra.mxu0 0
    %954 = vmatpush.bf16.msra.mxu0 0
    %955 = vmatpush.bf16.msra.mxu0 0
    %956 = vmatpush.bf16.msra.mxu0 %v945
    %957 = vmatmul.bf16.gmra.mxu0 %v943
    %v958 = vpop.f32.mrf.mxu0
    %v959 = vadd.f32 %v66, %v958
    %v960 = vpop.f32.mrf.mxu0
    %961 = vdwg.mxu0
    %962 = vmatpush.bf16.msra.mxu0 0
    %963 = vmatpush.bf16.msra.mxu0 0
    %964 = vmatpush.bf16.msra.mxu0 0
    %965 = vmatpush.bf16.msra.mxu0 0
    %966 = vmatpush.bf16.msra.mxu0 0
    %967 = vmatpush.bf16.msra.mxu0 0
    %968 = vmatpush.bf16.msra.mxu0 0
    %969 = vmatpush.bf16.msra.mxu0 %v947
    %970 = vmatmul.bf16.gmra.mxu0 %v943
    %v971 = vpop.f32.mrf.mxu0
    %v972 = vadd.f32 %v67, %v971
    %v973 = vpop.f32.mrf.mxu0
    %974 = vdwg.mxu0
    %v975 = vadd.f32 %v926, %v959
    %v976 = vxor.u32 %v975, 2147483648
    %v977 = vmul.f32 %v976, 1.442695
    %v978 = vpow.pop %v977
    %v979 = vadd.f32 %v978, 1.0
    %v980 = vrcp.pop %v979
    %v981 = vmul.f32 %v979, %v980
    %v982 = vsub.f32 1.0, %v981
    %v983 = vmul.f32 %v980, %v982
    %v984 = vadd.f32 %v980, %v983
    %vm985 = vweird.f32 %v979
    %vm986 = vweird.f32 %v980
    %vm987 = vmor %vm985, %vm986
    %v988 = vsel %vm987, %v980, %v984
    %v989 = vand.u32 2147483647, %v979
    %vm990 = vcmp.eq.f32.partialorder %v989, 8.507059e+37
    %v991 = vand.u32 %v979, 2147483648
    %v992 = vor.u32 1.1754944e-38, %v991
    %v993 = vsel %vm990, %v992, %v988
    %v994 = vmul.f32 1.0, %v993
    %996 = vrot.lane.b32.xlu0 %v927, 96
    %v997 = vpop.permute.xlu0 %996
    %v999 = vmul.f32 %v994, %v997
    %v1000 = vadd.f32 %v927, %v999
    %v1001 = vtanh.pop %v1000
    %v1002 = vsub.f32 %v847, %v1001
    %1004 = vrot.lane.b32.xlu0 %v1002, 32
    %v1005 = vpop.permute.xlu0 %1004
    %v1007 = vmul.f32 %v994, %v1005
    %1009 = vrot.lane.b32.xlu0 %v1007, 96
    %v1010 = vpop.permute.xlu0 %1009
    %v1012 = vadd.f32 %v1001, %v1010
    %v1013 = vmul.f32 %v994, %v927
    %1015 = vrot.lane.b32.xlu0 %v1013, 64
    %v1016 = vpop.permute.xlu0 %1015
    %v1018 = vadd.f32 %v972, %v1016
    %v1019 = vtanh.pop %v1018
    %v1020 = vsub.f32 %v865, %v1019
    %1022 = vrot.lane.b32.xlu0 %v1020, 96
    %v1023 = vpop.permute.xlu0 %1022
    %v1025 = vmul.f32 %v994, %v1023
    %1027 = vrot.lane.b32.xlu0 %v1025, 32
    %v1028 = vpop.permute.xlu0 %1027
    %v1030 = vadd.f32 %v1019, %v1028
    %v1031 = vpack.c.bf16 %v1030, %v1030
    %v1032 = vpack.c.bf16 %v1012, %v1012
    %v1034 = vsel %vm187, %v1032, 0
    %1036 = vmatpush.bf16.msra.mxu0 0
    %1037 = vmatpush.bf16.msra.mxu0 0
    %1038 = vmatpush.bf16.msra.mxu0 0
    %1039 = vmatpush.bf16.msra.mxu0 0
    %1040 = vmatpush.bf16.msra.mxu0 0
    %1041 = vmatpush.bf16.msra.mxu0 0
    %1042 = vmatpush.bf16.msra.mxu0 %v181
    %1043 = vmatpush.bf16.msra.mxu0 %v179
    %1044 = vmatmul.bf16.gmra.mxu0 %v1034
    %v1045 = vpop.f32.mrf.mxu0
    %v1046 = vadd.f32 0.0, %v1045
    %v1047 = vpop.f32.mrf.mxu0
    %1048 = vdwg.mxu0
    %1049 = vmatpush.bf16.msra.mxu0 0
    %1050 = vmatpush.bf16.msra.mxu0 0
    %1051 = vmatpush.bf16.msra.mxu0 0
    %1052 = vmatpush.bf16.msra.mxu0 0
    %1053 = vmatpush.bf16.msra.mxu0 0
    %1054 = vmatpush.bf16.msra.mxu0 0
    %1055 = vmatpush.bf16.msra.mxu0 %v182
    %1056 = vmatpush.bf16.msra.mxu0 %v180
    %1057 = vmatmul.bf16.gmra.mxu0 %v1034
    %v1058 = vpop.f32.mrf.mxu0
    %v1059 = vadd.f32 0.0, %v1058
    %v1060 = vpop.f32.mrf.mxu0
    %1061 = vdwg.mxu0
    %v1063 = vsel %vm187, %v1031, 0
    %1065 = vmatpush.bf16.msra.mxu0 0
    %1066 = vmatpush.bf16.msra.mxu0 0
    %1067 = vmatpush.bf16.msra.mxu0 0
    %1068 = vmatpush.bf16.msra.mxu0 0
    %1069 = vmatpush.bf16.msra.mxu0 0
    %1070 = vmatpush.bf16.msra.mxu0 0
    %1071 = vmatpush.bf16.msra.mxu0 %v231
    %1072 = vmatpush.bf16.msra.mxu0 %v229
    %1073 = vmatmul.bf16.gmra.mxu0 %v1063
    %v1074 = vpop.f32.mrf.mxu0
    %v1075 = vadd.f32 %v1046, %v1074
    %v1076 = vpop.f32.mrf.mxu0
    %1077 = vdwg.mxu0
    %1078 = vmatpush.bf16.msra.mxu0 0
    %1079 = vmatpush.bf16.msra.mxu0 0
    %1080 = vmatpush.bf16.msra.mxu0 0
    %1081 = vmatpush.bf16.msra.mxu0 0
    %1082 = vmatpush.bf16.msra.mxu0 0
    %1083 = vmatpush.bf16.msra.mxu0 0
    %1084 = vmatpush.bf16.msra.mxu0 %v232
    %1085 = vmatpush.bf16.msra.mxu0 %v230
    %1086 = vmatmul.bf16.gmra.mxu0 %v1063
    %v1087 = vpop.f32.mrf.mxu0
    %v1088 = vadd.f32 %v1059, %v1087
    %v1089 = vpop.f32.mrf.mxu0
    %1090 = vdwg.mxu0
    %v1091 = vadd.f32 %v1075, %v60
    %v1092 = vadd.f32 %v1088, %v61
    %v1093 = vld [vmem:[%s0 + $0x6] sm:$0x1]
    %v1094 = vld [vmem:[%s0 + $0xe] sm:$0x1]
    %v1095 = vpack.c.bf16 %v1093, %v1093
    %v1096 = vpack.c.bf16 %v1094, %v1094
    %v1099 = vunpack.c.l.b16 %v1095
    %v1100 = vunpack.c.l.b16 %v1096
    %v1101 = vrot.slane %v1100, 7
    %v1102 = vsel %vm79, %v1101, %v1099
    %v1103 = vpack.c.b16 %v1102, %v1102
    %1104 = vst [vmem:[#allocation1] ss:$4 sm:$0xff] %v57
    %v1105 = vld.sshfl [vmem:[#allocation1] sm:$0xff pattern:$0x73625140]
    %v1106 = vld.sshfl [vmem:[#allocation1 + $0x8] sm:$0xff pattern:$0x73625140]
    %v1108 = vsel %vm86, %v1103, 0
    %v1110 = vsel %vm90, %v1105, 0
    %v1112 = vsel %vm90, %v1106, 0
    %1114 = vmatpush.bf16.msra.mxu0 0
    %1115 = vmatpush.bf16.msra.mxu0 0
    %1116 = vmatpush.bf16.msra.mxu0 0
    %1117 = vmatpush.bf16.msra.mxu0 0
    %1118 = vmatpush.bf16.msra.mxu0 0
    %1119 = vmatpush.bf16.msra.mxu0 0
    %1120 = vmatpush.bf16.msra.mxu0 0
    %1121 = vmatpush.bf16.msra.mxu0 %v1110
    %1122 = vmatmul.bf16.gmra.mxu0 %v1108
    %v1123 = vpop.f32.mrf.mxu0
    %v1124 = vadd.f32 %v66, %v1123
    %v1125 = vpop.f32.mrf.mxu0
    %1126 = vdwg.mxu0
    %1127 = vmatpush.bf16.msra.mxu0 0
    %1128 = vmatpush.bf16.msra.mxu0 0
    %1129 = vmatpush.bf16.msra.mxu0 0
    %1130 = vmatpush.bf16.msra.mxu0 0
    %1131 = vmatpush.bf16.msra.mxu0 0
    %1132 = vmatpush.bf16.msra.mxu0 0
    %1133 = vmatpush.bf16.msra.mxu0 0
    %1134 = vmatpush.bf16.msra.mxu0 %v1112
    %1135 = vmatmul.bf16.gmra.mxu0 %v1108
    %v1136 = vpop.f32.mrf.mxu0
    %v1137 = vadd.f32 %v67, %v1136
    %v1138 = vpop.f32.mrf.mxu0
    %1139 = vdwg.mxu0
    %v1140 = vadd.f32 %v1091, %v1124
    %v1141 = vxor.u32 %v1140, 2147483648
    %v1142 = vmul.f32 %v1141, 1.442695
    %v1143 = vpow.pop %v1142
    %v1144 = vadd.f32 %v1143, 1.0
    %v1145 = vrcp.pop %v1144
    %v1146 = vmul.f32 %v1144, %v1145
    %v1147 = vsub.f32 1.0, %v1146
    %v1148 = vmul.f32 %v1145, %v1147
    %v1149 = vadd.f32 %v1145, %v1148
    %vm1150 = vweird.f32 %v1144
    %vm1151 = vweird.f32 %v1145
    %vm1152 = vmor %vm1150, %vm1151
    %v1153 = vsel %vm1152, %v1145, %v1149
    %v1154 = vand.u32 2147483647, %v1144
    %vm1155 = vcmp.eq.f32.partialorder %v1154, 8.507059e+37
    %v1156 = vand.u32 %v1144, 2147483648
    %v1157 = vor.u32 1.1754944e-38, %v1156
    %v1158 = vsel %vm1155, %v1157, %v1153
    %v1159 = vmul.f32 1.0, %v1158
    %1161 = vrot.lane.b32.xlu0 %v1092, 96
    %v1162 = vpop.permute.xlu0 %1161
    %v1164 = vmul.f32 %v1159, %v1162
    %v1165 = vadd.f32 %v1092, %v1164
    %v1166 = vtanh.pop %v1165
    %v1167 = vsub.f32 %v1012, %v1166
    %1169 = vrot.lane.b32.xlu0 %v1167, 32
    %v1170 = vpop.permute.xlu0 %1169
    %v1172 = vmul.f32 %v1159, %v1170
    %1174 = vrot.lane.b32.xlu0 %v1172, 96
    %v1175 = vpop.permute.xlu0 %1174
    %v1177 = vadd.f32 %v1166, %v1175
    %v1178 = vmul.f32 %v1159, %v1092
    %1180 = vrot.lane.b32.xlu0 %v1178, 64
    %v1181 = vpop.permute.xlu0 %1180
    %v1183 = vadd.f32 %v1137, %v1181
    %v1184 = vtanh.pop %v1183
    %v1185 = vsub.f32 %v1030, %v1184
    %1187 = vrot.lane.b32.xlu0 %v1185, 96
    %v1188 = vpop.permute.xlu0 %1187
    %v1190 = vmul.f32 %v1159, %v1188
    %1192 = vrot.lane.b32.xlu0 %v1190, 32
    %v1193 = vpop.permute.xlu0 %1192
    %v1195 = vadd.f32 %v1184, %v1193
    %v1196 = vpack.c.bf16 %v1195, %v1195
    %v1197 = vpack.c.bf16 %v1177, %v1177
    %v1199 = vsel %vm187, %v1197, 0
    %1201 = vmatpush.bf16.msra.mxu0 0
    %1202 = vmatpush.bf16.msra.mxu0 0
    %1203 = vmatpush.bf16.msra.mxu0 0
    %1204 = vmatpush.bf16.msra.mxu0 0
    %1205 = vmatpush.bf16.msra.mxu0 0
    %1206 = vmatpush.bf16.msra.mxu0 0
    %1207 = vmatpush.bf16.msra.mxu0 %v181
    %1208 = vmatpush.bf16.msra.mxu0 %v179
    %1209 = vmatmul.bf16.gmra.mxu0 %v1199
    %v1210 = vpop.f32.mrf.mxu0
    %v1211 = vadd.f32 0.0, %v1210
    %v1212 = vpop.f32.mrf.mxu0
    %1213 = vdwg.mxu0
    %1214 = vmatpush.bf16.msra.mxu0 0
    %1215 = vmatpush.bf16.msra.mxu0 0
    %1216 = vmatpush.bf16.msra.mxu0 0
    %1217 = vmatpush.bf16.msra.mxu0 0
    %1218 = vmatpush.bf16.msra.mxu0 0
    %1219 = vmatpush.bf16.msra.mxu0 0
    %1220 = vmatpush.bf16.msra.mxu0 %v182
    %1221 = vmatpush.bf16.msra.mxu0 %v180
    %1222 = vmatmul.bf16.gmra.mxu0 %v1199
    %v1223 = vpop.f32.mrf.mxu0
    %v1224 = vadd.f32 0.0, %v1223
    %v1225 = vpop.f32.mrf.mxu0
    %1226 = vdwg.mxu0
    %v1228 = vsel %vm187, %v1196, 0
    %1230 = vmatpush.bf16.msra.mxu0 0
    %1231 = vmatpush.bf16.msra.mxu0 0
    %1232 = vmatpush.bf16.msra.mxu0 0
    %1233 = vmatpush.bf16.msra.mxu0 0
    %1234 = vmatpush.bf16.msra.mxu0 0
    %1235 = vmatpush.bf16.msra.mxu0 0
    %1236 = vmatpush.bf16.msra.mxu0 %v231
    %1237 = vmatpush.bf16.msra.mxu0 %v229
    %1238 = vmatmul.bf16.gmra.mxu0 %v1228
    %v1239 = vpop.f32.mrf.mxu0
    %v1240 = vadd.f32 %v1211, %v1239
    %v1241 = vpop.f32.mrf.mxu0
    %1242 = vdwg.mxu0
    %1243 = vmatpush.bf16.msra.mxu0 0
    %1244 = vmatpush.bf16.msra.mxu0 0
    %1245 = vmatpush.bf16.msra.mxu0 0
    %1246 = vmatpush.bf16.msra.mxu0 0
    %1247 = vmatpush.bf16.msra.mxu0 0
    %1248 = vmatpush.bf16.msra.mxu0 0
    %1249 = vmatpush.bf16.msra.mxu0 %v232
    %1250 = vmatpush.bf16.msra.mxu0 %v230
    %1251 = vmatmul.bf16.gmra.mxu0 %v1228
    %v1252 = vpop.f32.mrf.mxu0
    %v1253 = vadd.f32 %v1224, %v1252
    %v1254 = vpop.f32.mrf.mxu0
    %1255 = vdwg.mxu0
    %v1256 = vadd.f32 %v1240, %v60
    %v1257 = vadd.f32 %v1253, %v61
    %v1258 = vld [vmem:[%s0 + $0x7] sm:$0x1]
    %v1259 = vld [vmem:[%s0 + $0xf] sm:$0x1]
    %v1260 = vpack.c.bf16 %v1258, %v1258
    %v1261 = vpack.c.bf16 %v1259, %v1259
    %v1264 = vunpack.c.l.b16 %v1260
    %v1265 = vunpack.c.l.b16 %v1261
    %v1266 = vrot.slane %v1265, 7
    %v1267 = vsel %vm79, %v1266, %v1264
    %v1268 = vpack.c.b16 %v1267, %v1267
    %1269 = vst [vmem:[#allocation1] ss:$4 sm:$0xff] %v57
    %v1270 = vld.sshfl [vmem:[#allocation1] sm:$0xff pattern:$0x73625140]
    %v1271 = vld.sshfl [vmem:[#allocation1 + $0x8] sm:$0xff pattern:$0x73625140]
    %v1273 = vsel %vm86, %v1268, 0
    %v1275 = vsel %vm90, %v1270, 0
    %v1277 = vsel %vm90, %v1271, 0
    %1279 = vmatpush.bf16.msra.mxu0 0
    %1280 = vmatpush.bf16.msra.mxu0 0
    %1281 = vmatpush.bf16.msra.mxu0 0
    %1282 = vmatpush.bf16.msra.mxu0 0
    %1283 = vmatpush.bf16.msra.mxu0 0
    %1284 = vmatpush.bf16.msra.mxu0 0
    %1285 = vmatpush.bf16.msra.mxu0 0
    %1286 = vmatpush.bf16.msra.mxu0 %v1275
    %1287 = vmatmul.bf16.gmra.mxu0 %v1273
    %v1288 = vpop.f32.mrf.mxu0
    %v1289 = vadd.f32 %v66, %v1288
    %v1290 = vpop.f32.mrf.mxu0
    %1291 = vdwg.mxu0
    %1292 = vmatpush.bf16.msra.mxu0 0
    %1293 = vmatpush.bf16.msra.mxu0 0
    %1294 = vmatpush.bf16.msra.mxu0 0
    %1295 = vmatpush.bf16.msra.mxu0 0
    %1296 = vmatpush.bf16.msra.mxu0 0
    %1297 = vmatpush.bf16.msra.mxu0 0
    %1298 = vmatpush.bf16.msra.mxu0 0
    %1299 = vmatpush.bf16.msra.mxu0 %v1277
    %1300 = vmatmul.bf16.gmra.mxu0 %v1273
    %v1301 = vpop.f32.mrf.mxu0
    %v1302 = vadd.f32 %v67, %v1301
    %v1303 = vpop.f32.mrf.mxu0
    %1304 = vdwg.mxu0
    %v1305 = vadd.f32 %v1256, %v1289
    %v1306 = vxor.u32 %v1305, 2147483648
    %v1307 = vmul.f32 %v1306, 1.442695
    %v1308 = vpow.pop %v1307
    %v1309 = vadd.f32 %v1308, 1.0
    %v1310 = vrcp.pop %v1309
    %v1311 = vmul.f32 %v1309, %v1310
    %v1312 = vsub.f32 1.0, %v1311
    %v1313 = vmul.f32 %v1310, %v1312
    %v1314 = vadd.f32 %v1310, %v1313
    %vm1315 = vweird.f32 %v1309
    %vm1316 = vweird.f32 %v1310
    %vm1317 = vmor %vm1315, %vm1316
    %v1318 = vsel %vm1317, %v1310, %v1314
    %v1319 = vand.u32 2147483647, %v1309
    %vm1320 = vcmp.eq.f32.partialorder %v1319, 8.507059e+37
    %v1321 = vand.u32 %v1309, 2147483648
    %v1322 = vor.u32 1.1754944e-38, %v1321
    %v1323 = vsel %vm1320, %v1322, %v1318
    %v1324 = vmul.f32 1.0, %v1323
    %1326 = vrot.lane.b32.xlu0 %v1257, 96
    %v1327 = vpop.permute.xlu0 %1326
    %v1329 = vmul.f32 %v1324, %v1327
    %v1330 = vadd.f32 %v1257, %v1329
    %v1331 = vtanh.pop %v1330
    %v1332 = vsub.f32 %v1177, %v1331
    %1334 = vrot.lane.b32.xlu0 %v1332, 32
    %v1335 = vpop.permute.xlu0 %1334
    %v1337 = vmul.f32 %v1324, %v1335
    %1339 = vrot.lane.b32.xlu0 %v1337, 96
    %v1340 = vpop.permute.xlu0 %1339
    %v1342 = vadd.f32 %v1331, %v1340
    %v1343 = vmul.f32 %v1324, %v1257
    %1345 = vrot.lane.b32.xlu0 %v1343, 64
    %v1346 = vpop.permute.xlu0 %1345
    %v1348 = vadd.f32 %v1302, %v1346
    %v1349 = vtanh.pop %v1348
    %v1350 = vsub.f32 %v1195, %v1349
    %1352 = vrot.lane.b32.xlu0 %v1350, 96
    %v1353 = vpop.permute.xlu0 %1352
    %v1355 = vmul.f32 %v1324, %v1353
    %1357 = vrot.lane.b32.xlu0 %v1355, 32
    %v1358 = vpop.permute.xlu0 %1357
    %v1360 = vadd.f32 %v1349, %v1358
    %v1361 = vpack.c.bf16 %v1360, %v1360
    %v1362 = vpack.c.bf16 %v1342, %v1342
    %v1364 = vsel %vm187, %v1362, 0
    %1366 = vmatpush.bf16.msra.mxu0 0
    %1367 = vmatpush.bf16.msra.mxu0 0
    %1368 = vmatpush.bf16.msra.mxu0 0
    %1369 = vmatpush.bf16.msra.mxu0 0
    %1370 = vmatpush.bf16.msra.mxu0 0
    %1371 = vmatpush.bf16.msra.mxu0 0
    %1372 = vmatpush.bf16.msra.mxu0 %v181
    %1373 = vmatpush.bf16.msra.mxu0 %v179
    %1374 = vmatmul.bf16.gmra.mxu0 %v1364
    %v1375 = vpop.f32.mrf.mxu0
    %v1376 = vadd.f32 0.0, %v1375
    %v1377 = vpop.f32.mrf.mxu0
    %1378 = vdwg.mxu0
    %1379 = vmatpush.bf16.msra.mxu0 0
    %1380 = vmatpush.bf16.msra.mxu0 0
    %1381 = vmatpush.bf16.msra.mxu0 0
    %1382 = vmatpush.bf16.msra.mxu0 0
    %1383 = vmatpush.bf16.msra.mxu0 0
    %1384 = vmatpush.bf16.msra.mxu0 0
    %1385 = vmatpush.bf16.msra.mxu0 %v182
    %1386 = vmatpush.bf16.msra.mxu0 %v180
    %1387 = vmatmul.bf16.gmra.mxu0 %v1364
    %v1388 = vpop.f32.mrf.mxu0
    %v1389 = vadd.f32 0.0, %v1388
    %v1390 = vpop.f32.mrf.mxu0
    %1391 = vdwg.mxu0
    %v1393 = vsel %vm187, %v1361, 0
    %1395 = vmatpush.bf16.msra.mxu0 0
    %1396 = vmatpush.bf16.msra.mxu0 0
    %1397 = vmatpush.bf16.msra.mxu0 0
    %1398 = vmatpush.bf16.msra.mxu0 0
    %1399 = vmatpush.bf16.msra.mxu0 0
    %1400 = vmatpush.bf16.msra.mxu0 0
    %1401 = vmatpush.bf16.msra.mxu0 %v231
    %1402 = vmatpush.bf16.msra.mxu0 %v229
    %1403 = vmatmul.bf16.gmra.mxu0 %v1393
    %v1404 = vpop.f32.mrf.mxu0
    %v1405 = vadd.f32 %v1376, %v1404
    %v1406 = vpop.f32.mrf.mxu0
    %1407 = vdwg.mxu0
    %1408 = vmatpush.bf16.msra.mxu0 0
    %1409 = vmatpush.bf16.msra.mxu0 0
    %1410 = vmatpush.bf16.msra.mxu0 0
    %1411 = vmatpush.bf16.msra.mxu0 0
    %1412 = vmatpush.bf16.msra.mxu0 0
    %1413 = vmatpush.bf16.msra.mxu0 0
    %1414 = vmatpush.bf16.msra.mxu0 %v232
    %1415 = vmatpush.bf16.msra.mxu0 %v230
    %1416 = vmatmul.bf16.gmra.mxu0 %v1393
    %v1417 = vpop.f32.mrf.mxu0
    %v1418 = vadd.f32 %v1389, %v1417
    %v1419 = vpop.f32.mrf.mxu0
    %1420 = vdwg.mxu0
    %v1421 = vadd.f32 %v1405, %v60
    %v1422 = vadd.f32 %v1418, %v61
    %v1423 = vxor.u32 %v1421, 2147483648
    %v1424 = vmul.f32 %v1423, 1.442695
    %v1425 = vpow.pop %v1424
    %v1426 = vadd.f32 %v1425, 1.0
    %v1427 = vrcp.pop %v1426
    %v1428 = vmul.f32 %v1426, %v1427
    %v1429 = vsub.f32 1.0, %v1428
    %v1430 = vmul.f32 %v1427, %v1429
    %v1431 = vadd.f32 %v1427, %v1430
    %vm1432 = vweird.f32 %v1426
    %vm1433 = vweird.f32 %v1427
    %vm1434 = vmor %vm1432, %vm1433
    %v1435 = vsel %vm1434, %v1427, %v1431
    %v1436 = vand.u32 2147483647, %v1426
    %vm1437 = vcmp.eq.f32.partialorder %v1436, 8.507059e+37
    %v1438 = vand.u32 %v1426, 2147483648
    %v1439 = vor.u32 1.1754944e-38, %v1438
    %v1440 = vsel %vm1437, %v1439, %v1435
    %v1441 = vmul.f32 1.0, %v1440
    %1443 = vrot.lane.b32.xlu0 %v1422, 96
    %v1444 = vpop.permute.xlu0 %1443
    %v1446 = vmul.f32 %v1441, %v1444
    %v1447 = vadd.f32 %v1422, %v1446
    %v1448 = vtanh.pop %v1447
    %v1449 = vsub.f32 %v1342, %v1448
    %1451 = vrot.lane.b32.xlu0 %v1449, 32
    %v1452 = vpop.permute.xlu0 %1451
    %v1454 = vmul.f32 %v1441, %v1452
    %1456 = vrot.lane.b32.xlu0 %v1454, 96
    %v1457 = vpop.permute.xlu0 %1456
    %v1459 = vadd.f32 %v1448, %v1457
    %v1460 = vld [vmem:[%s7] sm:$0xff]
    %v1461 = vld [vmem:[%s7 + $0x8] sm:$0xff]
    %v1462 = vld [vmem:[%s7 + $0x10] sm:$0xff]
    %v1463 = vld [vmem:[%s7 + $0x18] sm:$0xff]
    %v1464 = vld [vmem:[%s8] sm:$0x1]
    %v1466 = vperm.slane %v1464, 0
    %v1469 = vsel %vm187, %v1459, 0
    %1471 = vmatpush.msra.mxu0 0.0
    %1472 = vmatpush.msra.mxu0 0.0
    %1473 = vmatpush.msra.mxu0 0.0
    %1474 = vmatpush.msra.mxu0 0.0
    %1475 = vmatpush.msra.mxu0 0.0
    %1476 = vmatpush.msra.mxu0 0.0
    %1477 = vmatpush.msra.mxu0 0.0
    %1478 = vmatpush.msra.mxu0 0.0
    %1479 = vmatpush.msra.mxu0 0.0
    %1480 = vmatpush.msra.mxu0 0.0
    %1481 = vmatpush.msra.mxu0 0.0
    %1482 = vmatpush.msra.mxu0 0.0
    %1483 = vmatpush.msra.mxu0 %v1463
    %1484 = vmatpush.msra.mxu0 %v1462
    %1485 = vmatpush.msra.mxu0 %v1461
    %1486 = vmatpush.msra.mxu0 %v1460
    %1487 = vmatmul.f32.gmra.mxu0 %v1469
    %v1488 = vpop.f32.mrf.mxu0
    %v1489 = vadd.f32 %v1466, %v1488
    %1490 = vdwg.mxu0
    %vm1491 = vcmask 123904
    %1492 = vst.msk [vmem:[%s9] sm:$0x3] %vm1491, %v1489
    // Predicated region
    $region42: #{gru_stacked_forward.1} parent=1 // pred_check
      _
    $region43: #{gru_stacked_forward.1} parent=1 // pred_check_branch
      %1494 = sbr.rel (0) target = $region45
    $region44: #{gru_stacked_forward.1} parent=1 // pred_region
      _
    $region45: #{gru_stacked_forward.1} parent=1 // pred_fallthru
      _
    // Predicated region
    $region46: #{gru_stacked_forward.1} parent=1 // pred_check
      _
    $region47: #{gru_stacked_forward.1} parent=1 // pred_check_branch
      %1496 = sbr.rel (0) target = $region49
    $region48: #{gru_stacked_forward.1} parent=1 // pred_region
      _
    $region49: #{gru_stacked_forward.1} parent=1 // pred_fallthru
      _
    %1497 = vsyncpa [#allocation3], 1

</llo_original>
